<compile_context>
chip_gen: v7x
topology: tpu7x:2x2x1
jax: 0.10.0
libtpu: 0.0.40
codegen_flags: <defaults>
</compile_context>

<pallas_src>
import jax
import jax.numpy as jnp
import numpy as np
from jax import lax
from jax.experimental import pallas as pl
from jax.experimental.pallas import tpu as pltpu


# ----------------------------------------------------------------------------
# Fused kernel: conv1 -> conv2 -> conv3 -> residual add -> 2x2/stride-2 upconv
# ----------------------------------------------------------------------------
def _fused_mid_block_kernel(x_ref,
                            b1_ref, s1_ref, t1_ref,
                            b2_ref, s2_ref, t2_ref,
                            b3_ref, s3_ref, t3_ref,
                            bu_ref, bb_ref,
                            up_ref, xs_ref):
    # x_ref : (1, H, W*Cin)        row-flattened input image
    # bK_ref: (3, W*Ci, W*Co)      banded 3x3 conv weights (dx folded in)
    # sK/tK : (1, W*Co)            folded BN scale / (conv-bias + BN) shift
    # bu_ref: (W*Co, 4*W*Cup)      block-diag ConvTranspose weights (ky,kx folded)
    # bb_ref: (1, 4*W*Cup)         tiled ConvTranspose bias
    # up_ref: (1, H, 4*W*Cup)      lane order == (2h+ky, 2w+kx, cu)
    # xs_ref: (1, H, W*Co)
    H = x_ref.shape[1]

    def pad_rows(x2d):
        z = jnp.zeros((1, x2d.shape[1]), jnp.float32)
        return jnp.concatenate([z, x2d, z], axis=0)            # (H+2, W*C)

    def conv_bn_relu(x2d, band_ref, scale, shift):
        xp = pad_rows(x2d)
        acc = jnp.zeros((H, band_ref.shape[2]), jnp.float32)
        for dy in range(3):
            lhs = x2d if dy == 1 else xp[dy:dy + H, :]
            acc = acc + jnp.dot(lhs, band_ref[dy],
                                preferred_element_type=jnp.float32)
        return jnp.maximum(acc * scale + shift, 0.0)           # (H, W*Cout)

    x0 = x_ref[0]                                              # (H, W*Cin)
    x1 = conv_bn_relu(x0, b1_ref, s1_ref[...], t1_ref[...])    # self.conv
    x2 = conv_bn_relu(x1, b2_ref, s2_ref[...], t2_ref[...])    # mid_conv[0:3]
    x3 = conv_bn_relu(x2, b3_ref, s3_ref[...], t3_ref[...])    # mid_conv[3:6]

    xs = x3 + x1                                               # residual add
    xs_ref[0] = xs

    # up-conv: one matmul covers all four (ky, kx) taps; bias added once.
    up = jnp.dot(xs, bu_ref[...], preferred_element_type=jnp.float32) + bb_ref[...]
    up_ref[0] = up                                             # (H, 4*W*Cup)


# ----------------------------------------------------------------------------
# Weight preprocessing (done once, outside the forward pass)
# ----------------------------------------------------------------------------
def _make_conv_band(w_hwio, width):
    """(3,3,Cin,Cout) HWIO conv weights -> (3, W*Cin, W*Cout) banded matrices.

    band[dy, wi*Cin+ci, wo*Cout+co] = w[dy, wi-wo+1, ci, co] when |wi-wo| <= 1,
    so  out_row[h] = sum_dy xpad_row[h+dy] @ band[dy]  implements the 3x3 conv
    (padding=1) on row-flattened images.
    """
    _, _, cin, cout = w_hwio.shape
    sel = np.zeros((width, 3, width), np.float32)
    for wo in range(width):
        for dx in range(3):
            wi = wo + dx - 1
            if 0 <= wi < width:
                sel[wi, dx, wo] = 1.0
    band = jnp.einsum("ydio,adb->yaibo", w_hwio, jnp.asarray(sel))
    return band.reshape(3, width * cin, width * cout)


def _make_up_band(wt, width):
    """(2,2,C,Cup) transposed-conv weights -> (W*C, 4*W*Cup) block-diag matrix.

    Output lane index = ky*(2*W*Cup) + w*(2*Cup) + kx*Cup + cu, which is exactly
    the row-major order of the (2H, 2W, Cup) upsampled image, so the result of
    one matmul reshapes directly into the output.
    """
    _, _, c, cup = wt.shape
    eye = jnp.eye(width, dtype=jnp.float32)
    band = jnp.einsum("yxio,ab->aiybxo", wt, eye)      # (W, C, 2, W, 2, Cup)
    return band.reshape(width * c, 2 * width * 2 * cup)


def _tile_lane(v, reps):
    return jnp.tile(v.reshape(-1), reps).reshape(1, -1)


def preprocess_params(params, width):
    (w1, s1, t1), (w2, s2, t2), (w3, s3, t3), (wt, bt) = params
    return (
        _make_conv_band(w1, width), _tile_lane(s1, width), _tile_lane(t1, width),
        _make_conv_band(w2, width), _tile_lane(s2, width), _tile_lane(t2, width),
        _make_conv_band(w3, width), _tile_lane(s3, width), _tile_lane(t3, width),
        _make_up_band(wt, width), _tile_lane(bt, 2 * width * 2),
    )


# ----------------------------------------------------------------------------
# Forward pass (single fused pallas_call)
# ----------------------------------------------------------------------------
def my_mid_block_forward(x_nchw, prep):
    (b1, s1, t1, b2, s2, t2, b3, s3, t3, bu, bb) = prep
    N, Cin, H, W = x_nchw.shape
    Cout = s1.shape[-1] // W
    Cup = bb.shape[-1] // (4 * W)

    # NCHW -> NHWC -> row-flattened (one XLA copy; fused with the reshape).
    x_flat = jnp.transpose(x_nchw, (0, 2, 3, 1)).reshape(N, H, W * Cin)

    def _resident(arr):
        nd = arr.ndim
        return pl.BlockSpec(arr.shape, lambda n: (0,) * nd)

    up_flat, xs_flat = pl.pallas_call(
        _fused_mid_block_kernel,
        out_shape=(
            jax.ShapeDtypeStruct((N, H, 4 * W * Cup), jnp.float32),
            jax.ShapeDtypeStruct((N, H, W * Cout), jnp.float32),
        ),
        grid_spec=pltpu.PrefetchScalarGridSpec(
            num_scalar_prefetch=0,
            grid=(N,),
            in_specs=[
                pl.BlockSpec((1, H, W * Cin), lambda n: (n, 0, 0)),
                _resident(b1), _resident(s1), _resident(t1),
                _resident(b2), _resident(s2), _resident(t2),
                _resident(b3), _resident(s3), _resident(t3),
                _resident(bu), _resident(bb),
            ],
            out_specs=[
                pl.BlockSpec((1, H, 4 * W * Cup), lambda n: (n, 0, 0)),
                pl.BlockSpec((1, H, W * Cout), lambda n: (n, 0, 0)),
            ],
        ),
        compiler_params=pltpu.CompilerParams(
            dimension_semantics=("parallel",)),        # batch -> both TCs on v7x
    )(x_flat, b1, s1, t1, b2, s2, t2, b3, s3, t3, bu, bb)

    # Un-flatten (pure layout work; XLA fuses these with the final transpose).
    up_nhwc = up_flat.reshape(N, 2 * H, 2 * W, Cup)
    xs_nhwc = xs_flat.reshape(N, H, W, Cout)
    return (jnp.transpose(up_nhwc, (0, 3, 1, 2)),
            jnp.transpose(xs_nhwc, (0, 3, 1, 2)))


# ----------------------------------------------------------------------------
# Parameter construction (deterministic) and a pure-JAX reference
# ----------------------------------------------------------------------------
def make_conv_bn_params(key, cin, cout, eps=1e-5):
    k1, k2, k3, k4 = jax.random.split(key, 4)
    w = 0.1 * jax.random.normal(k1, (3, 3, cin, cout), jnp.float32)   # HWIO
    bias = 0.1 * jax.random.normal(k2, (cout,), jnp.float32)
    gamma = 1.0 + 0.1 * jax.random.normal(k3, (cout,), jnp.float32)
    beta = 0.1 * jax.random.normal(k4, (cout,), jnp.float32)
    running_mean = jnp.zeros((cout,), jnp.float32)
    running_var = jnp.ones((cout,), jnp.float32)
    scale = gamma / jnp.sqrt(running_var + eps)
    shift = (bias - running_mean) * scale + beta
    return w, scale, shift


def _ref_cbr(x, w, scale, shift):
    y = lax.conv_general_dilated(x, w, (1, 1), "SAME",
                                 dimension_numbers=("NHWC", "HWIO", "NHWC"))
    y = y * scale.reshape(1, 1, 1, -1) + shift.reshape(1, 1, 1, -1)
    return jnp.maximum(y, 0.0)


def _ref_upconv(x, w, b):
    N, H, W, _ = x.shape
    Cup = w.shape[-1]
    t = jnp.einsum("nhwi,yxio->nhywxo", x, w)        # (N, H, 2, W, 2, Cup)
    t = t + b.reshape(1, 1, 1, 1, 1, Cup)
    return t.reshape(N, 2 * H, 2 * W, Cup)


def ref_forward(x_nchw, params):
    x = jnp.transpose(x_nchw, (0, 2, 3, 1))
    (w1, s1, t1), (w2, s2, t2), (w3, s3, t3), (wt, bt) = params
    x1 = _ref_cbr(x, w1, s1, t1)
    x3 = _ref_cbr(_ref_cbr(x1, w2, s2, t2), w3, s3, t3)
    xs = x3 + x1
    up = _ref_upconv(xs, wt, bt)
    return jnp.transpose(up, (0, 3, 1, 2)), jnp.transpose(xs, (0, 3, 1, 2))


if __name__ == "__main__":
    key = jax.random.PRNGKey(0)
    in_c, out_c = 4, 8                  # out_c must be even for the up-conv
    N, H, W = 2, 16, 16

    k_x, k1, k2, k3, k4, k5 = jax.random.split(key, 6)
    x_nchw = jax.random.normal(k_x, (N, in_c, H, W), jnp.float32)

    p_conv = make_conv_bn_params(k1, in_c, out_c)
    p_mid1 = make_conv_bn_params(k2, out_c, out_c)
    p_mid2 = make_conv_bn_params(k3, out_c, out_c)
    wt = 0.1 * jax.random.normal(k4, (2, 2, out_c, out_c // 2), jnp.float32)
    bt = 0.1 * jax.random.normal(k5, (out_c // 2,), jnp.float32)
    params = (p_conv, p_mid1, p_mid2, (wt, bt))

    prep = preprocess_params(params, W)              # one-time weight prep
    fwd = jax.jit(my_mid_block_forward)

    up, xs = fwd(x_nchw, prep)
    up = jax.block_until_ready(up)
    xs = jax.block_until_ready(xs)

    assert up.shape == (N, out_c // 2, 2 * H, 2 * W)
    assert xs.shape == (N, out_c, H, W)

    up_ref, xs_ref = ref_forward(x_nchw, params)
    np.testing.assert_allclose(np.asarray(up), np.asarray(up_ref),
                               rtol=1e-4, atol=1e-4)
    np.testing.assert_allclose(np.asarray(xs), np.asarray(xs_ref),
                               rtol=1e-4, atol=1e-4)

    print("KERNEL_OK")
</pallas_src>

<mosaic_0001>
module attributes {stable_mosaic.version = 11 : i64} {
  func.func @_fused_mid_block_kernel(%arg0: i32, %arg1: memref<1x16x64xf32, #tpu.memory_space<vmem>>, %arg2: memref<3x64x128xf32, #tpu.memory_space<vmem>>, %arg3: memref<1x128xf32, #tpu.memory_space<vmem>>, %arg4: memref<1x128xf32, #tpu.memory_space<vmem>>, %arg5: memref<3x128x128xf32, #tpu.memory_space<vmem>>, %arg6: memref<1x128xf32, #tpu.memory_space<vmem>>, %arg7: memref<1x128xf32, #tpu.memory_space<vmem>>, %arg8: memref<3x128x128xf32, #tpu.memory_space<vmem>>, %arg9: memref<1x128xf32, #tpu.memory_space<vmem>>, %arg10: memref<1x128xf32, #tpu.memory_space<vmem>>, %arg11: memref<128x256xf32, #tpu.memory_space<vmem>>, %arg12: memref<1x256xf32, #tpu.memory_space<vmem>>, %arg13: memref<1x16x256xf32, #tpu.memory_space<vmem>>, %arg14: memref<1x16x128xf32, #tpu.memory_space<vmem>>) attributes {dimension_semantics = [#tpu.dimension_semantics<parallel>], iteration_bounds = array<i64: 2>, scalar_prefetch = 0 : i64, scratch_operands = 0 : i64, tpu.core_type = #tpu.core_type<tc>, window_params = [{transform_indices = @transform_0, window_bounds = array<i64: 1, 16, 64>}, {pipeline_mode = #tpu.pipeline_mode<synchronous>, transform_indices = @transform_1, window_bounds = array<i64: 3, 64, 128>}, {pipeline_mode = #tpu.pipeline_mode<synchronous>, transform_indices = @transform_2, window_bounds = array<i64: 1, 128>}, {pipeline_mode = #tpu.pipeline_mode<synchronous>, transform_indices = @transform_3, window_bounds = array<i64: 1, 128>}, {pipeline_mode = #tpu.pipeline_mode<synchronous>, transform_indices = @transform_4, window_bounds = array<i64: 3, 128, 128>}, {pipeline_mode = #tpu.pipeline_mode<synchronous>, transform_indices = @transform_5, window_bounds = array<i64: 1, 128>}, {pipeline_mode = #tpu.pipeline_mode<synchronous>, transform_indices = @transform_6, window_bounds = array<i64: 1, 128>}, {pipeline_mode = #tpu.pipeline_mode<synchronous>, transform_indices = @transform_7, window_bounds = array<i64: 3, 128, 128>}, {pipeline_mode = #tpu.pipeline_mode<synchronous>, transform_indices = @transform_8, window_bounds = array<i64: 1, 128>}, {pipeline_mode = #tpu.pipeline_mode<synchronous>, transform_indices = @transform_9, window_bounds = array<i64: 1, 128>}, {pipeline_mode = #tpu.pipeline_mode<synchronous>, transform_indices = @transform_10, window_bounds = array<i64: 128, 256>}, {pipeline_mode = #tpu.pipeline_mode<synchronous>, transform_indices = @transform_11, window_bounds = array<i64: 1, 256>}, {transform_indices = @transform_12, window_bounds = array<i64: 1, 16, 256>}, {transform_indices = @transform_13, window_bounds = array<i64: 1, 16, 128>}]} {
    %c0 = arith.constant 0 : index
    %c0_0 = arith.constant 0 : index
    %c0_1 = arith.constant 0 : index
    %0 = vector.load %arg1[%c0, %c0_0, %c0_1] : memref<1x16x64xf32, #tpu.memory_space<vmem>>, vector<1x16x64xf32>
    %1 = vector.shape_cast %0 : vector<1x16x64xf32> to vector<16x64xf32>
    %c0_2 = arith.constant 0 : index
    %c0_3 = arith.constant 0 : index
    %2 = vector.load %arg3[%c0_2, %c0_3] : memref<1x128xf32, #tpu.memory_space<vmem>>, vector<1x128xf32>
    %c0_4 = arith.constant 0 : index
    %c0_5 = arith.constant 0 : index
    %3 = vector.load %arg4[%c0_4, %c0_5] : memref<1x128xf32, #tpu.memory_space<vmem>>, vector<1x128xf32>
    %cst = arith.constant 0.000000e+00 : f32
    %4 = vector.broadcast %cst : f32 to vector<1x64xf32>
    %5 = tpu.concatenate %4, %1, %4 in 0 : vector<1x64xf32>, vector<16x64xf32>, vector<1x64xf32> -> vector<18x64xf32>
    %cst_6 = arith.constant 0.000000e+00 : f32
    %6 = vector.broadcast %cst_6 : f32 to vector<16x128xf32>
    %7 = vector.extract_strided_slice %5 {offsets = [0, 0], sizes = [16, 64], strides = [1, 1]} : vector<18x64xf32> to vector<16x64xf32>
    %c0_7 = arith.constant 0 : index
    %c0_8 = arith.constant 0 : index
    %c0_9 = arith.constant 0 : index
    %8 = vector.load %arg2[%c0_7, %c0_8, %c0_9] : memref<3x64x128xf32, #tpu.memory_space<vmem>>, vector<1x64x128xf32>
    %9 = vector.shape_cast %8 : vector<1x64x128xf32> to vector<64x128xf32>
    %cst_10 = arith.constant dense<0.000000e+00> : vector<16x128xf32>
    %10 = tpu.matmul %7, %9, %cst_10 {dimension_numbers = #tpu.dot_dimension_numbers<[1], [0], [0], [1], [0, 0, 1, 1], [], []>} : vector<16x64xf32>, vector<64x128xf32>, vector<16x128xf32> -> vector<16x128xf32>
    %11 = arith.addf %6, %10 : vector<16x128xf32>
    %c1 = arith.constant 1 : index
    %c0_11 = arith.constant 0 : index
    %c0_12 = arith.constant 0 : index
    %12 = vector.load %arg2[%c1, %c0_11, %c0_12] : memref<3x64x128xf32, #tpu.memory_space<vmem>>, vector<1x64x128xf32>
    %13 = vector.shape_cast %12 : vector<1x64x128xf32> to vector<64x128xf32>
    %cst_13 = arith.constant dense<0.000000e+00> : vector<16x128xf32>
    %14 = tpu.matmul %1, %13, %cst_13 {dimension_numbers = #tpu.dot_dimension_numbers<[1], [0], [0], [1], [0, 0, 1, 1], [], []>} : vector<16x64xf32>, vector<64x128xf32>, vector<16x128xf32> -> vector<16x128xf32>
    %15 = arith.addf %11, %14 : vector<16x128xf32>
    %16 = vector.extract_strided_slice %5 {offsets = [2, 0], sizes = [16, 64], strides = [1, 1]} : vector<18x64xf32> to vector<16x64xf32>
    %c2 = arith.constant 2 : index
    %c0_14 = arith.constant 0 : index
    %c0_15 = arith.constant 0 : index
    %17 = vector.load %arg2[%c2, %c0_14, %c0_15] : memref<3x64x128xf32, #tpu.memory_space<vmem>>, vector<1x64x128xf32>
    %18 = vector.shape_cast %17 : vector<1x64x128xf32> to vector<64x128xf32>
    %cst_16 = arith.constant dense<0.000000e+00> : vector<16x128xf32>
    %19 = tpu.matmul %16, %18, %cst_16 {dimension_numbers = #tpu.dot_dimension_numbers<[1], [0], [0], [1], [0, 0, 1, 1], [], []>} : vector<16x64xf32>, vector<64x128xf32>, vector<16x128xf32> -> vector<16x128xf32>
    %20 = arith.addf %15, %19 : vector<16x128xf32>
    %21 = vector.broadcast %2 : vector<1x128xf32> to vector<16x128xf32>
    %22 = arith.mulf %20, %21 : vector<16x128xf32>
    %23 = vector.broadcast %3 : vector<1x128xf32> to vector<16x128xf32>
    %24 = arith.addf %22, %23 : vector<16x128xf32>
    %cst_17 = arith.constant 0.000000e+00 : f32
    %25 = vector.broadcast %cst_17 : f32 to vector<16x128xf32>
    %26 = arith.maximumf %24, %25 : vector<16x128xf32>
    %c0_18 = arith.constant 0 : index
    %c0_19 = arith.constant 0 : index
    %27 = vector.load %arg6[%c0_18, %c0_19] : memref<1x128xf32, #tpu.memory_space<vmem>>, vector<1x128xf32>
    %c0_20 = arith.constant 0 : index
    %c0_21 = arith.constant 0 : index
    %28 = vector.load %arg7[%c0_20, %c0_21] : memref<1x128xf32, #tpu.memory_space<vmem>>, vector<1x128xf32>
    %cst_22 = arith.constant 0.000000e+00 : f32
    %29 = vector.broadcast %cst_22 : f32 to vector<1x128xf32>
    %30 = tpu.concatenate %29, %26, %29 in 0 : vector<1x128xf32>, vector<16x128xf32>, vector<1x128xf32> -> vector<18x128xf32>
    %cst_23 = arith.constant 0.000000e+00 : f32
    %31 = vector.broadcast %cst_23 : f32 to vector<16x128xf32>
    %32 = vector.extract_strided_slice %30 {offsets = [0, 0], sizes = [16, 128], strides = [1, 1]} : vector<18x128xf32> to vector<16x128xf32>
    %c0_24 = arith.constant 0 : index
    %c0_25 = arith.constant 0 : index
    %c0_26 = arith.constant 0 : index
    %33 = vector.load %arg5[%c0_24, %c0_25, %c0_26] : memref<3x128x128xf32, #tpu.memory_space<vmem>>, vector<1x128x128xf32>
    %34 = vector.shape_cast %33 : vector<1x128x128xf32> to vector<128x128xf32>
    %cst_27 = arith.constant dense<0.000000e+00> : vector<16x128xf32>
    %35 = tpu.matmul %32, %34, %cst_27 {dimension_numbers = #tpu.dot_dimension_numbers<[1], [0], [0], [1], [0, 0, 1, 1], [], []>} : vector<16x128xf32>, vector<128x128xf32>, vector<16x128xf32> -> vector<16x128xf32>
    %36 = arith.addf %31, %35 : vector<16x128xf32>
    %c1_28 = arith.constant 1 : index
    %c0_29 = arith.constant 0 : index
    %c0_30 = arith.constant 0 : index
    %37 = vector.load %arg5[%c1_28, %c0_29, %c0_30] : memref<3x128x128xf32, #tpu.memory_space<vmem>>, vector<1x128x128xf32>
    %38 = vector.shape_cast %37 : vector<1x128x128xf32> to vector<128x128xf32>
    %cst_31 = arith.constant dense<0.000000e+00> : vector<16x128xf32>
    %39 = tpu.matmul %26, %38, %cst_31 {dimension_numbers = #tpu.dot_dimension_numbers<[1], [0], [0], [1], [0, 0, 1, 1], [], []>} : vector<16x128xf32>, vector<128x128xf32>, vector<16x128xf32> -> vector<16x128xf32>
    %40 = arith.addf %36, %39 : vector<16x128xf32>
    %41 = vector.extract_strided_slice %30 {offsets = [2, 0], sizes = [16, 128], strides = [1, 1]} : vector<18x128xf32> to vector<16x128xf32>
    %c2_32 = arith.constant 2 : index
    %c0_33 = arith.constant 0 : index
    %c0_34 = arith.constant 0 : index
    %42 = vector.load %arg5[%c2_32, %c0_33, %c0_34] : memref<3x128x128xf32, #tpu.memory_space<vmem>>, vector<1x128x128xf32>
    %43 = vector.shape_cast %42 : vector<1x128x128xf32> to vector<128x128xf32>
    %cst_35 = arith.constant dense<0.000000e+00> : vector<16x128xf32>
    %44 = tpu.matmul %41, %43, %cst_35 {dimension_numbers = #tpu.dot_dimension_numbers<[1], [0], [0], [1], [0, 0, 1, 1], [], []>} : vector<16x128xf32>, vector<128x128xf32>, vector<16x128xf32> -> vector<16x128xf32>
    %45 = arith.addf %40, %44 : vector<16x128xf32>
    %46 = vector.broadcast %27 : vector<1x128xf32> to vector<16x128xf32>
    %47 = arith.mulf %45, %46 : vector<16x128xf32>
    %48 = vector.broadcast %28 : vector<1x128xf32> to vector<16x128xf32>
    %49 = arith.addf %47, %48 : vector<16x128xf32>
    %cst_36 = arith.constant 0.000000e+00 : f32
    %50 = vector.broadcast %cst_36 : f32 to vector<16x128xf32>
    %51 = arith.maximumf %49, %50 : vector<16x128xf32>
    %c0_37 = arith.constant 0 : index
    %c0_38 = arith.constant 0 : index
    %52 = vector.load %arg9[%c0_37, %c0_38] : memref<1x128xf32, #tpu.memory_space<vmem>>, vector<1x128xf32>
    %c0_39 = arith.constant 0 : index
    %c0_40 = arith.constant 0 : index
    %53 = vector.load %arg10[%c0_39, %c0_40] : memref<1x128xf32, #tpu.memory_space<vmem>>, vector<1x128xf32>
    %cst_41 = arith.constant 0.000000e+00 : f32
    %54 = vector.broadcast %cst_41 : f32 to vector<1x128xf32>
    %55 = tpu.concatenate %54, %51, %54 in 0 : vector<1x128xf32>, vector<16x128xf32>, vector<1x128xf32> -> vector<18x128xf32>
    %cst_42 = arith.constant 0.000000e+00 : f32
    %56 = vector.broadcast %cst_42 : f32 to vector<16x128xf32>
    %57 = vector.extract_strided_slice %55 {offsets = [0, 0], sizes = [16, 128], strides = [1, 1]} : vector<18x128xf32> to vector<16x128xf32>
    %c0_43 = arith.constant 0 : index
    %c0_44 = arith.constant 0 : index
    %c0_45 = arith.constant 0 : index
    %58 = vector.load %arg8[%c0_43, %c0_44, %c0_45] : memref<3x128x128xf32, #tpu.memory_space<vmem>>, vector<1x128x128xf32>
    %59 = vector.shape_cast %58 : vector<1x128x128xf32> to vector<128x128xf32>
    %cst_46 = arith.constant dense<0.000000e+00> : vector<16x128xf32>
    %60 = tpu.matmul %57, %59, %cst_46 {dimension_numbers = #tpu.dot_dimension_numbers<[1], [0], [0], [1], [0, 0, 1, 1], [], []>} : vector<16x128xf32>, vector<128x128xf32>, vector<16x128xf32> -> vector<16x128xf32>
    %61 = arith.addf %56, %60 : vector<16x128xf32>
    %c1_47 = arith.constant 1 : index
    %c0_48 = arith.constant 0 : index
    %c0_49 = arith.constant 0 : index
    %62 = vector.load %arg8[%c1_47, %c0_48, %c0_49] : memref<3x128x128xf32, #tpu.memory_space<vmem>>, vector<1x128x128xf32>
    %63 = vector.shape_cast %62 : vector<1x128x128xf32> to vector<128x128xf32>
    %cst_50 = arith.constant dense<0.000000e+00> : vector<16x128xf32>
    %64 = tpu.matmul %51, %63, %cst_50 {dimension_numbers = #tpu.dot_dimension_numbers<[1], [0], [0], [1], [0, 0, 1, 1], [], []>} : vector<16x128xf32>, vector<128x128xf32>, vector<16x128xf32> -> vector<16x128xf32>
    %65 = arith.addf %61, %64 : vector<16x128xf32>
    %66 = vector.extract_strided_slice %55 {offsets = [2, 0], sizes = [16, 128], strides = [1, 1]} : vector<18x128xf32> to vector<16x128xf32>
    %c2_51 = arith.constant 2 : index
    %c0_52 = arith.constant 0 : index
    %c0_53 = arith.constant 0 : index
    %67 = vector.load %arg8[%c2_51, %c0_52, %c0_53] : memref<3x128x128xf32, #tpu.memory_space<vmem>>, vector<1x128x128xf32>
    %68 = vector.shape_cast %67 : vector<1x128x128xf32> to vector<128x128xf32>
    %cst_54 = arith.constant dense<0.000000e+00> : vector<16x128xf32>
    %69 = tpu.matmul %66, %68, %cst_54 {dimension_numbers = #tpu.dot_dimension_numbers<[1], [0], [0], [1], [0, 0, 1, 1], [], []>} : vector<16x128xf32>, vector<128x128xf32>, vector<16x128xf32> -> vector<16x128xf32>
    %70 = arith.addf %65, %69 : vector<16x128xf32>
    %71 = vector.broadcast %52 : vector<1x128xf32> to vector<16x128xf32>
    %72 = arith.mulf %70, %71 : vector<16x128xf32>
    %73 = vector.broadcast %53 : vector<1x128xf32> to vector<16x128xf32>
    %74 = arith.addf %72, %73 : vector<16x128xf32>
    %cst_55 = arith.constant 0.000000e+00 : f32
    %75 = vector.broadcast %cst_55 : f32 to vector<16x128xf32>
    %76 = arith.maximumf %74, %75 : vector<16x128xf32>
    %77 = arith.addf %76, %26 : vector<16x128xf32>
    %c0_56 = arith.constant 0 : index
    %c0_57 = arith.constant 0 : index
    %c0_58 = arith.constant 0 : index
    %78 = vector.load %arg14[%c0_56, %c0_57, %c0_58] : memref<1x16x128xf32, #tpu.memory_space<vmem>>, vector<1x16x128xf32>
    %79 = vector.shape_cast %78 : vector<1x16x128xf32> to vector<16x128xf32>
    %80 = vector.shape_cast %77 : vector<16x128xf32> to vector<1x16x128xf32>
    tpu.vector_store %arg14[%c0_56, %c0_57, %c0_58], %80 {strides = array<i32>} : memref<1x16x128xf32, #tpu.memory_space<vmem>>, vector<1x16x128xf32>,
    %c0_59 = arith.constant 0 : index
    %c0_60 = arith.constant 0 : index
    %81 = vector.load %arg11[%c0_59, %c0_60] : memref<128x256xf32, #tpu.memory_space<vmem>>, vector<128x256xf32>
    %cst_61 = arith.constant dense<0.000000e+00> : vector<16x256xf32>
    %82 = tpu.matmul %77, %81, %cst_61 {dimension_numbers = #tpu.dot_dimension_numbers<[1], [0], [0], [1], [0, 0, 1, 1], [], []>} : vector<16x128xf32>, vector<128x256xf32>, vector<16x256xf32> -> vector<16x256xf32>
    %c0_62 = arith.constant 0 : index
    %c0_63 = arith.constant 0 : index
    %83 = vector.load %arg12[%c0_62, %c0_63] : memref<1x256xf32, #tpu.memory_space<vmem>>, vector<1x256xf32>
    %84 = vector.broadcast %83 : vector<1x256xf32> to vector<16x256xf32>
    %85 = arith.addf %82, %84 : vector<16x256xf32>
    %c0_64 = arith.constant 0 : index
    %c0_65 = arith.constant 0 : index
    %c0_66 = arith.constant 0 : index
    %86 = vector.load %arg13[%c0_64, %c0_65, %c0_66] : memref<1x16x256xf32, #tpu.memory_space<vmem>>, vector<1x16x256xf32>
    %87 = vector.shape_cast %86 : vector<1x16x256xf32> to vector<16x256xf32>
    %88 = vector.shape_cast %85 : vector<16x256xf32> to vector<1x16x256xf32>
    tpu.vector_store %arg13[%c0_64, %c0_65, %c0_66], %88 {strides = array<i32>} : memref<1x16x256xf32, #tpu.memory_space<vmem>>, vector<1x16x256xf32>,
    return
  }
  func.func @transform_0(%arg0: i32) -> (i32, i32, i32) {
    %c0_i32 = arith.constant 0 : i32
    %c0_i32_0 = arith.constant 0 : i32
    %c0_i32_1 = arith.constant 0 : i32
    return %arg0, %c0_i32, %c0_i32_0 : i32, i32, i32
  }
  func.func @transform_1(%arg0: i32) -> (i32, i32, i32) {
    %c0_i32 = arith.constant 0 : i32
    %c0_i32_0 = arith.constant 0 : i32
    %c0_i32_1 = arith.constant 0 : i32
    %c0_i32_2 = arith.constant 0 : i32
    return %c0_i32, %c0_i32_0, %c0_i32_1 : i32, i32, i32
  }
  func.func @transform_2(%arg0: i32) -> (i32, i32) {
    %c0_i32 = arith.constant 0 : i32
    %c0_i32_0 = arith.constant 0 : i32
    %c0_i32_1 = arith.constant 0 : i32
    return %c0_i32, %c0_i32_0 : i32, i32
  }
  func.func @transform_3(%arg0: i32) -> (i32, i32) {
    %c0_i32 = arith.constant 0 : i32
    %c0_i32_0 = arith.constant 0 : i32
    %c0_i32_1 = arith.constant 0 : i32
    return %c0_i32, %c0_i32_0 : i32, i32
  }
  func.func @transform_4(%arg0: i32) -> (i32, i32, i32) {
    %c0_i32 = arith.constant 0 : i32
    %c0_i32_0 = arith.constant 0 : i32
    %c0_i32_1 = arith.constant 0 : i32
    %c0_i32_2 = arith.constant 0 : i32
    return %c0_i32, %c0_i32_0, %c0_i32_1 : i32, i32, i32
  }
  func.func @transform_5(%arg0: i32) -> (i32, i32) {
    %c0_i32 = arith.constant 0 : i32
    %c0_i32_0 = arith.constant 0 : i32
    %c0_i32_1 = arith.constant 0 : i32
    return %c0_i32, %c0_i32_0 : i32, i32
  }
  func.func @transform_6(%arg0: i32) -> (i32, i32) {
    %c0_i32 = arith.constant 0 : i32
    %c0_i32_0 = arith.constant 0 : i32
    %c0_i32_1 = arith.constant 0 : i32
    return %c0_i32, %c0_i32_0 : i32, i32
  }
  func.func @transform_7(%arg0: i32) -> (i32, i32, i32) {
    %c0_i32 = arith.constant 0 : i32
    %c0_i32_0 = arith.constant 0 : i32
    %c0_i32_1 = arith.constant 0 : i32
    %c0_i32_2 = arith.constant 0 : i32
    return %c0_i32, %c0_i32_0, %c0_i32_1 : i32, i32, i32
  }
  func.func @transform_8(%arg0: i32) -> (i32, i32) {
    %c0_i32 = arith.constant 0 : i32
    %c0_i32_0 = arith.constant 0 : i32
    %c0_i32_1 = arith.constant 0 : i32
    return %c0_i32, %c0_i32_0 : i32, i32
  }
  func.func @transform_9(%arg0: i32) -> (i32, i32) {
    %c0_i32 = arith.constant 0 : i32
    %c0_i32_0 = arith.constant 0 : i32
    %c0_i32_1 = arith.constant 0 : i32
    return %c0_i32, %c0_i32_0 : i32, i32
  }
  func.func @transform_10(%arg0: i32) -> (i32, i32) {
    %c0_i32 = arith.constant 0 : i32
    %c0_i32_0 = arith.constant 0 : i32
    %c0_i32_1 = arith.constant 0 : i32
    return %c0_i32, %c0_i32_0 : i32, i32
  }
  func.func @transform_11(%arg0: i32) -> (i32, i32) {
    %c0_i32 = arith.constant 0 : i32
    %c0_i32_0 = arith.constant 0 : i32
    %c0_i32_1 = arith.constant 0 : i32
    return %c0_i32, %c0_i32_0 : i32, i32
  }
  func.func @transform_12(%arg0: i32) -> (i32, i32, i32) {
    %c0_i32 = arith.constant 0 : i32
    %c0_i32_0 = arith.constant 0 : i32
    %c0_i32_1 = arith.constant 0 : i32
    return %arg0, %c0_i32, %c0_i32_0 : i32, i32, i32
  }
  func.func @transform_13(%arg0: i32) -> (i32, i32, i32) {
    %c0_i32 = arith.constant 0 : i32
    %c0_i32_0 = arith.constant 0 : i32
    %c0_i32_1 = arith.constant 0 : i32
    return %arg0, %c0_i32, %c0_i32_0 : i32, i32, i32
  }
}

</mosaic_0001>

<llo_original>
// kernel: my_mid_block_forward.1
$region0: #{my_mid_block_forward.1}
  #allocation0 [shape = 'u32[]', space=smem, size = 0x4, offset = 0x4, fixed_abs, tag = 'smem constant byte address 0x4 - core index']
  #allocation1 [shape = 'u32[144,128]{1,0:T(1,128)}', space=vmem, size = 0x12000, scoped, tag = 'internal scratch']
  %s0 = inlined_call_operand.vmem [shape: f32[2,16,64], index: 0, kind: input, shape index: {}]
  %s1 = inlined_call_operand.hbm [shape: f32[3,64,128], index: 1, kind: input, shape index: {}]
  %s2 = inlined_call_operand.vmem [shape: f32[1,128], index: 2, kind: input, shape index: {}]
  %s3 = inlined_call_operand.vmem [shape: f32[1,128], index: 3, kind: input, shape index: {}]
  %s4 = inlined_call_operand.vmem [shape: f32[3,128,128], index: 4, kind: input, shape index: {}]
  %s5 = inlined_call_operand.vmem [shape: f32[1,128], index: 5, kind: input, shape index: {}]
  %s6 = inlined_call_operand.vmem [shape: f32[1,128], index: 6, kind: input, shape index: {}]
  %s7 = inlined_call_operand.hbm [shape: f32[3,128,128], index: 7, kind: input, shape index: {}]
  %s8 = inlined_call_operand.vmem [shape: f32[1,128], index: 8, kind: input, shape index: {}]
  %s9 = inlined_call_operand.vmem [shape: f32[1,128], index: 9, kind: input, shape index: {}]
  %s10 = inlined_call_operand.hbm [shape: f32[128,256], index: 10, kind: input, shape index: {}]
  %s11 = inlined_call_operand.vmem [shape: f32[1,256], index: 11, kind: input, shape index: {}]
  %s12 = inlined_call_operand.vmem [shape: f32[2,16,256], index: 12, kind: output, shape index: {0}]
  %s13 = inlined_call_operand.vmem [shape: f32[2,16,128], index: 13, kind: output, shape index: {1}]
  %14 = xla_tuple %s12, %s13
  %s15 = sld [smem:[#allocation0]]
  $region101: #{my_mid_block_forward.1} parent=0
    _
  %s17 = ssub.s32 1, %s15
  %s18 = scalar_select 0, %s17, %s15
  $region1: #{my_mid_block_forward.1} parent=0
    #allocation2 [shape = 'u8[98304]{0}', space=vmem, size = 0x18000, scoped, tag = 'input window, operand 1, single buffered']
    #allocation3 [shape = 's32[2]{0}', space=sflag, size = 0x8, scoped, tag = 'scoped memory for my_mid_block_forward.1']
    #allocation4 [shape = 'u8[196608]{0}', space=vmem, size = 0x30000, scoped, tag = 'input window, operand 7, single buffered']
    #allocation5 [shape = 's32[1]{0}', space=sflag, size = 0x4, scoped, tag = 'scoped memory for my_mid_block_forward.1']
    #allocation6 [shape = 'u8[131072]{0}', space=vmem, size = 0x20000, scoped, tag = 'input window, operand 10, single buffered']
    %19 = vsyncpa [#allocation3], 0
    %20 = vsyncpa [#allocation5], 0
    loop: start=0, step=1, limit=4
    $region2: #{my_mid_block_forward.1} parent=1 // loop_pre_header
      _
    $region3: #{my_mid_block_forward.1} parent=1 // loop_header
      %s22 = sphi 0, %s26
      %p23 = scmp.ge.s32.totalorder %s22, 4
      %s32 = sphi 0, %s34
      %s35 = sphi 0, %s32
      %s36 = sphi 0, %s35
      %s52 = sphi 0, %s36
      %s56 = sphi 0, %s56
      %s58 = sphi 0, %s56
      %s59 = sphi 0, %s58
      %s73 = sphi 0, %s59
      %s77 = sphi 0, %s77
      %s79 = sphi 0, %s77
      %s80 = sphi 0, %s79
      %s94 = sphi 0, %s80
      %s98 = sphi 0, %s98
      %s100 = sphi 0, %s98
      %s101 = sphi 0, %s100
      %s115 = sphi 0, %s101
      %s119 = sphi 0, %s119
      %s121 = sphi 0, %s119
      %s122 = sphi 0, %s121
      %s136 = sphi 0, %s122
      %s140 = sphi 0, %s140
      %s142 = sphi 0, %s140
      %s143 = sphi 0, %s142
      %s157 = sphi 0, %s143
      %s161 = sphi 0, %s161
      %s163 = sphi 0, %s161
      %s164 = sphi 0, %s163
      %s178 = sphi 0, %s164
      %s182 = sphi 0, %s182
      %s184 = sphi 0, %s182
      %s185 = sphi 0, %s184
      %s199 = sphi 0, %s185
      %s203 = sphi 0, %s203
      %s205 = sphi 0, %s203
      %s206 = sphi 0, %s205
      %s220 = sphi 0, %s206
      %s224 = sphi 0, %s224
      %s226 = sphi 0, %s224
      %s227 = sphi 0, %s226
      %s241 = sphi 0, %s227
      %s245 = sphi 0, %s245
      %s247 = sphi 0, %s245
      %s248 = sphi 0, %s247
      %s262 = sphi 0, %s248
      %s266 = sphi 0, %s266
      %s268 = sphi 0, %s266
      %s269 = sphi 0, %s268
      %s283 = sphi 0, %s269
      %s289 = sphi 0, %s291
      %s292 = sphi 0, %s289
      %s293 = sphi 0, %s292
      %s309 = sphi 0, %s293
      %s315 = sphi 0, %s317
      %s318 = sphi 0, %s315
      %s319 = sphi 0, %s318
      %s335 = sphi 0, %s319
    $region4: #{my_mid_block_forward.1} parent=1 // loop_header_branch
      %25 = sbr.rel (%p23) target = $region8
    $region5: #{my_mid_block_forward.1} parent=1 // loop_body
      %s27 = ssub.s32 %s22, 1
      %s28 = ssub.s32 %s22, 2
      %s29 = sadd.s32 %s22, 1
      %s30 = ssub.s32 %s22, %s29
      %p31 = scmp.eq.s32.totalorder %s30, 0
      %s33 = sadd.s32 %s32, 1
      %s34 = scalar_select %p31, %s32, %s33
      %p37 = pneg %p31
      %p38 = scmp.eq.s32.totalorder %s22, 1
      %p39 = por %p37, %p38
      %p40 = scmp.ne.s32.totalorder %s32, %s35
      %p41 = scmp.eq.s32.totalorder %s22, 0
      %p42 = por %p40, %p41
      %p43 = scmp.ne.s32.totalorder %s32, %s35
      %p44 = scmp.eq.s32.totalorder %s27, 1
      %p45 = por %p43, %p44
      %p46 = scmp.ne.s32.totalorder %s35, %s36
      %p47 = scmp.eq.s32.totalorder %s27, 0
      %p48 = por %p46, %p47
      %p49 = scmp.ne.s32.totalorder %s35, %s36
      %p50 = scmp.eq.s32.totalorder %s28, 1
      %p51 = por %p49, %p50
      %p53 = scmp.ne.s32.totalorder %s36, %s52
      %p54 = scmp.eq.s32.totalorder %s28, 0
      %p55 = por %p53, %p54
      %s57 = sadd.s32 %s56, 1
      %p60 = scmp.eq.s32.totalorder %s22, 1
      %p61 = scmp.ne.s32.totalorder %s56, %s58
      %p62 = scmp.eq.s32.totalorder %s22, 0
      %p63 = por %p61, %p62
      %p64 = scmp.ne.s32.totalorder %s56, %s58
      %p65 = scmp.eq.s32.totalorder %s27, 1
      %p66 = por %p64, %p65
      %p67 = scmp.ne.s32.totalorder %s58, %s59
      %p68 = scmp.eq.s32.totalorder %s27, 0
      %p69 = por %p67, %p68
      %p70 = scmp.ne.s32.totalorder %s58, %s59
      %p71 = scmp.eq.s32.totalorder %s28, 1
      %p72 = por %p70, %p71
      %p74 = scmp.ne.s32.totalorder %s59, %s73
      %p75 = scmp.eq.s32.totalorder %s28, 0
      %p76 = por %p74, %p75
      %s78 = sadd.s32 %s77, 1
      %p81 = scmp.eq.s32.totalorder %s22, 1
      %p82 = scmp.ne.s32.totalorder %s77, %s79
      %p83 = scmp.eq.s32.totalorder %s22, 0
      %p84 = por %p82, %p83
      %p85 = scmp.ne.s32.totalorder %s77, %s79
      %p86 = scmp.eq.s32.totalorder %s27, 1
      %p87 = por %p85, %p86
      %p88 = scmp.ne.s32.totalorder %s79, %s80
      %p89 = scmp.eq.s32.totalorder %s27, 0
      %p90 = por %p88, %p89
      %p91 = scmp.ne.s32.totalorder %s79, %s80
      %p92 = scmp.eq.s32.totalorder %s28, 1
      %p93 = por %p91, %p92
      %p95 = scmp.ne.s32.totalorder %s80, %s94
      %p96 = scmp.eq.s32.totalorder %s28, 0
      %p97 = por %p95, %p96
      %s99 = sadd.s32 %s98, 1
      %p102 = scmp.eq.s32.totalorder %s22, 1
      %p103 = scmp.ne.s32.totalorder %s98, %s100
      %p104 = scmp.eq.s32.totalorder %s22, 0
      %p105 = por %p103, %p104
      %p106 = scmp.ne.s32.totalorder %s98, %s100
      %p107 = scmp.eq.s32.totalorder %s27, 1
      %p108 = por %p106, %p107
      %p109 = scmp.ne.s32.totalorder %s100, %s101
      %p110 = scmp.eq.s32.totalorder %s27, 0
      %p111 = por %p109, %p110
      %p112 = scmp.ne.s32.totalorder %s100, %s101
      %p113 = scmp.eq.s32.totalorder %s28, 1
      %p114 = por %p112, %p113
      %p116 = scmp.ne.s32.totalorder %s101, %s115
      %p117 = scmp.eq.s32.totalorder %s28, 0
      %p118 = por %p116, %p117
      %s120 = sadd.s32 %s119, 1
      %p123 = scmp.eq.s32.totalorder %s22, 1
      %p124 = scmp.ne.s32.totalorder %s119, %s121
      %p125 = scmp.eq.s32.totalorder %s22, 0
      %p126 = por %p124, %p125
      %p127 = scmp.ne.s32.totalorder %s119, %s121
      %p128 = scmp.eq.s32.totalorder %s27, 1
      %p129 = por %p127, %p128
      %p130 = scmp.ne.s32.totalorder %s121, %s122
      %p131 = scmp.eq.s32.totalorder %s27, 0
      %p132 = por %p130, %p131
      %p133 = scmp.ne.s32.totalorder %s121, %s122
      %p134 = scmp.eq.s32.totalorder %s28, 1
      %p135 = por %p133, %p134
      %p137 = scmp.ne.s32.totalorder %s122, %s136
      %p138 = scmp.eq.s32.totalorder %s28, 0
      %p139 = por %p137, %p138
      %s141 = sadd.s32 %s140, 1
      %p144 = scmp.eq.s32.totalorder %s22, 1
      %p145 = scmp.ne.s32.totalorder %s140, %s142
      %p146 = scmp.eq.s32.totalorder %s22, 0
      %p147 = por %p145, %p146
      %p148 = scmp.ne.s32.totalorder %s140, %s142
      %p149 = scmp.eq.s32.totalorder %s27, 1
      %p150 = por %p148, %p149
      %p151 = scmp.ne.s32.totalorder %s142, %s143
      %p152 = scmp.eq.s32.totalorder %s27, 0
      %p153 = por %p151, %p152
      %p154 = scmp.ne.s32.totalorder %s142, %s143
      %p155 = scmp.eq.s32.totalorder %s28, 1
      %p156 = por %p154, %p155
      %p158 = scmp.ne.s32.totalorder %s143, %s157
      %p159 = scmp.eq.s32.totalorder %s28, 0
      %p160 = por %p158, %p159
      %s162 = sadd.s32 %s161, 1
      %p165 = scmp.eq.s32.totalorder %s22, 1
      %p166 = scmp.ne.s32.totalorder %s161, %s163
      %p167 = scmp.eq.s32.totalorder %s22, 0
      %p168 = por %p166, %p167
      %p169 = scmp.ne.s32.totalorder %s161, %s163
      %p170 = scmp.eq.s32.totalorder %s27, 1
      %p171 = por %p169, %p170
      %p172 = scmp.ne.s32.totalorder %s163, %s164
      %p173 = scmp.eq.s32.totalorder %s27, 0
      %p174 = por %p172, %p173
      %p175 = scmp.ne.s32.totalorder %s163, %s164
      %p176 = scmp.eq.s32.totalorder %s28, 1
      %p177 = por %p175, %p176
      %p179 = scmp.ne.s32.totalorder %s164, %s178
      %p180 = scmp.eq.s32.totalorder %s28, 0
      %p181 = por %p179, %p180
      %s183 = sadd.s32 %s182, 1
      %p186 = scmp.eq.s32.totalorder %s22, 1
      %p187 = scmp.ne.s32.totalorder %s182, %s184
      %p188 = scmp.eq.s32.totalorder %s22, 0
      %p189 = por %p187, %p188
      %p190 = scmp.ne.s32.totalorder %s182, %s184
      %p191 = scmp.eq.s32.totalorder %s27, 1
      %p192 = por %p190, %p191
      %p193 = scmp.ne.s32.totalorder %s184, %s185
      %p194 = scmp.eq.s32.totalorder %s27, 0
      %p195 = por %p193, %p194
      %p196 = scmp.ne.s32.totalorder %s184, %s185
      %p197 = scmp.eq.s32.totalorder %s28, 1
      %p198 = por %p196, %p197
      %p200 = scmp.ne.s32.totalorder %s185, %s199
      %p201 = scmp.eq.s32.totalorder %s28, 0
      %p202 = por %p200, %p201
      %s204 = sadd.s32 %s203, 1
      %p207 = scmp.eq.s32.totalorder %s22, 1
      %p208 = scmp.ne.s32.totalorder %s203, %s205
      %p209 = scmp.eq.s32.totalorder %s22, 0
      %p210 = por %p208, %p209
      %p211 = scmp.ne.s32.totalorder %s203, %s205
      %p212 = scmp.eq.s32.totalorder %s27, 1
      %p213 = por %p211, %p212
      %p214 = scmp.ne.s32.totalorder %s205, %s206
      %p215 = scmp.eq.s32.totalorder %s27, 0
      %p216 = por %p214, %p215
      %p217 = scmp.ne.s32.totalorder %s205, %s206
      %p218 = scmp.eq.s32.totalorder %s28, 1
      %p219 = por %p217, %p218
      %p221 = scmp.ne.s32.totalorder %s206, %s220
      %p222 = scmp.eq.s32.totalorder %s28, 0
      %p223 = por %p221, %p222
      %s225 = sadd.s32 %s224, 1
      %p228 = scmp.eq.s32.totalorder %s22, 1
      %p229 = scmp.ne.s32.totalorder %s224, %s226
      %p230 = scmp.eq.s32.totalorder %s22, 0
      %p231 = por %p229, %p230
      %p232 = scmp.ne.s32.totalorder %s224, %s226
      %p233 = scmp.eq.s32.totalorder %s27, 1
      %p234 = por %p232, %p233
      %p235 = scmp.ne.s32.totalorder %s226, %s227
      %p236 = scmp.eq.s32.totalorder %s27, 0
      %p237 = por %p235, %p236
      %p238 = scmp.ne.s32.totalorder %s226, %s227
      %p239 = scmp.eq.s32.totalorder %s28, 1
      %p240 = por %p238, %p239
      %p242 = scmp.ne.s32.totalorder %s227, %s241
      %p243 = scmp.eq.s32.totalorder %s28, 0
      %p244 = por %p242, %p243
      %s246 = sadd.s32 %s245, 1
      %p249 = scmp.eq.s32.totalorder %s22, 1
      %p250 = scmp.ne.s32.totalorder %s245, %s247
      %p251 = scmp.eq.s32.totalorder %s22, 0
      %p252 = por %p250, %p251
      %p253 = scmp.ne.s32.totalorder %s245, %s247
      %p254 = scmp.eq.s32.totalorder %s27, 1
      %p255 = por %p253, %p254
      %p256 = scmp.ne.s32.totalorder %s247, %s248
      %p257 = scmp.eq.s32.totalorder %s27, 0
      %p258 = por %p256, %p257
      %p259 = scmp.ne.s32.totalorder %s247, %s248
      %p260 = scmp.eq.s32.totalorder %s28, 1
      %p261 = por %p259, %p260
      %p263 = scmp.ne.s32.totalorder %s248, %s262
      %p264 = scmp.eq.s32.totalorder %s28, 0
      %p265 = por %p263, %p264
      %s267 = sadd.s32 %s266, 1
      %p270 = scmp.eq.s32.totalorder %s22, 1
      %p271 = scmp.ne.s32.totalorder %s266, %s268
      %p272 = scmp.eq.s32.totalorder %s22, 0
      %p273 = por %p271, %p272
      %p274 = scmp.ne.s32.totalorder %s266, %s268
      %p275 = scmp.eq.s32.totalorder %s27, 1
      %p276 = por %p274, %p275
      %p277 = scmp.ne.s32.totalorder %s268, %s269
      %p278 = scmp.eq.s32.totalorder %s27, 0
      %p279 = por %p277, %p278
      %p280 = scmp.ne.s32.totalorder %s268, %s269
      %p281 = scmp.eq.s32.totalorder %s28, 1
      %p282 = por %p280, %p281
      %p284 = scmp.ne.s32.totalorder %s269, %s283
      %p285 = scmp.eq.s32.totalorder %s28, 0
      %p286 = por %p284, %p285
      %s287 = ssub.s32 %s22, %s29
      %p288 = scmp.eq.s32.totalorder %s287, 0
      %s290 = sadd.s32 %s289, 1
      %s291 = scalar_select %p288, %s289, %s290
      %p294 = pneg %p288
      %p295 = scmp.eq.s32.totalorder %s22, 1
      %p296 = por %p294, %p295
      %p297 = scmp.ne.s32.totalorder %s289, %s292
      %p298 = scmp.eq.s32.totalorder %s22, 0
      %p299 = por %p297, %p298
      %p300 = scmp.ne.s32.totalorder %s289, %s292
      %p301 = scmp.eq.s32.totalorder %s27, 1
      %p302 = por %p300, %p301
      %p303 = scmp.ne.s32.totalorder %s292, %s293
      %p304 = scmp.eq.s32.totalorder %s27, 0
      %p305 = por %p303, %p304
      %p306 = scmp.ne.s32.totalorder %s292, %s293
      %p307 = scmp.eq.s32.totalorder %s28, 1
      %p308 = por %p306, %p307
      %p310 = scmp.ne.s32.totalorder %s293, %s309
      %p311 = scmp.eq.s32.totalorder %s28, 0
      %p312 = por %p310, %p311
      %s313 = ssub.s32 %s22, %s29
      %p314 = scmp.eq.s32.totalorder %s313, 0
      %s316 = sadd.s32 %s315, 1
      %s317 = scalar_select %p314, %s315, %s316
      %p320 = pneg %p314
      %p321 = scmp.eq.s32.totalorder %s22, 1
      %p322 = por %p320, %p321
      %p323 = scmp.ne.s32.totalorder %s315, %s318
      %p324 = scmp.eq.s32.totalorder %s22, 0
      %p325 = por %p323, %p324
      %p326 = scmp.ne.s32.totalorder %s315, %s318
      %p327 = scmp.eq.s32.totalorder %s27, 1
      %p328 = por %p326, %p327
      %p329 = scmp.ne.s32.totalorder %s318, %s319
      %p330 = scmp.eq.s32.totalorder %s27, 0
      %p331 = por %p329, %p330
      %p332 = scmp.ne.s32.totalorder %s318, %s319
      %p333 = scmp.eq.s32.totalorder %s28, 1
      %p334 = por %p332, %p333
      %p336 = scmp.ne.s32.totalorder %s319, %s335
      %p337 = scmp.eq.s32.totalorder %s28, 0
      %p338 = por %p336, %p337
      %p339 = scmp.le.s32.totalorder 1, %s22
      %p340 = scmp.lt.s32.totalorder %s22, 3
      %p341 = pnand %p339, %p340
      %p342 = pneg %p341
      // Predicated region
      $region9: #{my_mid_block_forward.1} parent=5 // pred_check
        _
      $region10: #{my_mid_block_forward.1} parent=5 // pred_check_branch
        %344 = sbr.rel (%p341) target = $region12
      $region11: #{my_mid_block_forward.1} parent=5 // pred_region
        %s345 = ssub.s32 %s22, 1
        // Predicated region
        $region13: #{my_mid_block_forward.1} parent=11 // pred_check
          %p346 = pneg %p69
        $region14: #{my_mid_block_forward.1} parent=11 // pred_check_branch
          %348 = sbr.rel (%p346) target = $region16
        $region15: #{my_mid_block_forward.1} parent=11 // pred_region
          %s350 = ssub.s32 3072, 3072
          %351 = vsyncadd [#allocation3], %s350
          %s352 = sshll.u32 [#allocation2], 4
          %s353 = int_to_ptr.vmem [resolvable:$true] %s352
          %358 = dma.hbm_to_vmem [thread:$0]  %s1, 3072, %s353, [#allocation3], 128, 128, 8
        $region16: #{my_mid_block_forward.1} parent=11 // pred_fallthru
          _
        // Predicated region
        $region17: #{my_mid_block_forward.1} parent=11 // pred_check
          %p359 = pneg %p90
        $region18: #{my_mid_block_forward.1} parent=11 // pred_check_branch
          %361 = sbr.rel (%p359) target = $region20
        $region19: #{my_mid_block_forward.1} parent=11 // pred_region
          _
        $region20: #{my_mid_block_forward.1} parent=11 // pred_fallthru
          _
        // Predicated region
        $region21: #{my_mid_block_forward.1} parent=11 // pred_check
          %p362 = pneg %p111
        $region22: #{my_mid_block_forward.1} parent=11 // pred_check_branch
          %364 = sbr.rel (%p362) target = $region24
        $region23: #{my_mid_block_forward.1} parent=11 // pred_region
          _
        $region24: #{my_mid_block_forward.1} parent=11 // pred_fallthru
          _
        // Predicated region
        $region25: #{my_mid_block_forward.1} parent=11 // pred_check
          %p365 = pneg %p132
        $region26: #{my_mid_block_forward.1} parent=11 // pred_check_branch
          %367 = sbr.rel (%p365) target = $region28
        $region27: #{my_mid_block_forward.1} parent=11 // pred_region
          _
        $region28: #{my_mid_block_forward.1} parent=11 // pred_fallthru
          _
        // Predicated region
        $region29: #{my_mid_block_forward.1} parent=11 // pred_check
          %p368 = pneg %p153
        $region30: #{my_mid_block_forward.1} parent=11 // pred_check_branch
          %370 = sbr.rel (%p368) target = $region32
        $region31: #{my_mid_block_forward.1} parent=11 // pred_region
          _
        $region32: #{my_mid_block_forward.1} parent=11 // pred_fallthru
          _
        // Predicated region
        $region33: #{my_mid_block_forward.1} parent=11 // pred_check
          %p371 = pneg %p174
        $region34: #{my_mid_block_forward.1} parent=11 // pred_check_branch
          %373 = sbr.rel (%p371) target = $region36
        $region35: #{my_mid_block_forward.1} parent=11 // pred_region
          _
        $region36: #{my_mid_block_forward.1} parent=11 // pred_fallthru
          _
        // Predicated region
        $region37: #{my_mid_block_forward.1} parent=11 // pred_check
          %p374 = pneg %p195
        $region38: #{my_mid_block_forward.1} parent=11 // pred_check_branch
          %376 = sbr.rel (%p374) target = $region40
        $region39: #{my_mid_block_forward.1} parent=11 // pred_region
          %s378 = ssub.s32 6144, 6144
          %379 = vsyncadd [#allocation5], %s378
          %s380 = sshll.u32 [#allocation4], 4
          %s381 = int_to_ptr.vmem [resolvable:$true] %s380
          %386 = dma.hbm_to_vmem [thread:$0]  %s7, 6144, %s381, [#allocation5], 128, 128, 8
        $region40: #{my_mid_block_forward.1} parent=11 // pred_fallthru
          _
        // Predicated region
        $region41: #{my_mid_block_forward.1} parent=11 // pred_check
          %p387 = pneg %p216
        $region42: #{my_mid_block_forward.1} parent=11 // pred_check_branch
          %389 = sbr.rel (%p387) target = $region44
        $region43: #{my_mid_block_forward.1} parent=11 // pred_region
          _
        $region44: #{my_mid_block_forward.1} parent=11 // pred_fallthru
          _
        // Predicated region
        $region45: #{my_mid_block_forward.1} parent=11 // pred_check
          %p390 = pneg %p237
        $region46: #{my_mid_block_forward.1} parent=11 // pred_check_branch
          %392 = sbr.rel (%p390) target = $region48
        $region47: #{my_mid_block_forward.1} parent=11 // pred_region
          _
        $region48: #{my_mid_block_forward.1} parent=11 // pred_fallthru
          _
        // Predicated region
        $region49: #{my_mid_block_forward.1} parent=11 // pred_check
          %p393 = pneg %p258
        $region50: #{my_mid_block_forward.1} parent=11 // pred_check_branch
          %395 = sbr.rel (%p393) target = $region52
        $region51: #{my_mid_block_forward.1} parent=11 // pred_region
          %s397 = ssub.s32 4096, 4096
          %398 = vsyncadd [#allocation5], %s397
          %s399 = sshll.u32 [#allocation6], 4
          %s400 = int_to_ptr.vmem [resolvable:$true] %s399
          %405 = dma.hbm_to_vmem [thread:$0]  %s10, 4096, %s400, [#allocation5], 256, 256, 16
        $region52: #{my_mid_block_forward.1} parent=11 // pred_fallthru
          _
        // Predicated region
        $region53: #{my_mid_block_forward.1} parent=11 // pred_check
          %p406 = pneg %p279
        $region54: #{my_mid_block_forward.1} parent=11 // pred_check_branch
          %408 = sbr.rel (%p406) target = $region56
        $region55: #{my_mid_block_forward.1} parent=11 // pred_region
          _
        $region56: #{my_mid_block_forward.1} parent=11 // pred_fallthru
          _
      $region12: #{my_mid_block_forward.1} parent=5 // pred_fallthru
        _
      %p409 = scmp.lt.s32.totalorder %s22, 2
      // Predicated region
      $region57: #{my_mid_block_forward.1} parent=5 // pred_check
        %p410 = pneg %p409
      $region58: #{my_mid_block_forward.1} parent=5 // pred_check_branch
        %412 = sbr.rel (%p410) target = $region60
      $region59: #{my_mid_block_forward.1} parent=5 // pred_region
        // Predicated region
        $region61: #{my_mid_block_forward.1} parent=59 // pred_check
          %p413 = pneg %p42
        $region62: #{my_mid_block_forward.1} parent=59 // pred_check_branch
          %415 = sbr.rel (%p413) target = $region64
        $region63: #{my_mid_block_forward.1} parent=59 // pred_region
          %p416 = scmp.lt.s32.totalorder %s22, 1
          %s417 = scalar_select %p416, %s22, 1
          %s418 = smul.addr %s417, 2
          %s419 = smul.addr %s418, 8
          %s420 = scalar_lea.vmem %s0, %s419
        $region64: #{my_mid_block_forward.1} parent=59 // pred_fallthru
          _
      $region60: #{my_mid_block_forward.1} parent=5 // pred_fallthru
        _
      %p421 = scmp.le.s32.totalorder 1, %s22
      %p422 = scmp.lt.s32.totalorder %s22, 3
      %p423 = pnand %p421, %p422
      %p424 = pneg %p423
      // Predicated region
      $region65: #{my_mid_block_forward.1} parent=5 // pred_check
        _
      $region66: #{my_mid_block_forward.1} parent=5 // pred_check_branch
        %426 = sbr.rel (%p423) target = $region68
      $region67: #{my_mid_block_forward.1} parent=5 // pred_region
        %s427 = ssub.s32 %s22, 1
        // Predicated region
        $region69: #{my_mid_block_forward.1} parent=67 // pred_check
          %p428 = pneg %p69
        $region70: #{my_mid_block_forward.1} parent=67 // pred_check_branch
          %430 = sbr.rel (%p428) target = $region72
        $region71: #{my_mid_block_forward.1} parent=67 // pred_region
          %431 = dma.done [#allocation3], 3072
        $region72: #{my_mid_block_forward.1} parent=67 // pred_fallthru
          _
        // Predicated region
        $region73: #{my_mid_block_forward.1} parent=67 // pred_check
          %p432 = pneg %p195
        $region74: #{my_mid_block_forward.1} parent=67 // pred_check_branch
          %434 = sbr.rel (%p432) target = $region76
        $region75: #{my_mid_block_forward.1} parent=67 // pred_region
          %435 = dma.done [#allocation5], 6144
        $region76: #{my_mid_block_forward.1} parent=67 // pred_fallthru
          _
        // Predicated region
        $region77: #{my_mid_block_forward.1} parent=67 // pred_check
          %p436 = pneg %p258
        $region78: #{my_mid_block_forward.1} parent=67 // pred_check_branch
          %438 = sbr.rel (%p436) target = $region80
        $region79: #{my_mid_block_forward.1} parent=67 // pred_region
          %439 = dma.done [#allocation5], 4096
        $region80: #{my_mid_block_forward.1} parent=67 // pred_fallthru
          _
        %p440 = scmp.lt.s32.totalorder %s27, 1
        %s441 = scalar_select %p440, %s27, 1
        %s442 = smul.addr %s441, 2
        %s443 = smul.addr %s442, 8
        %s444 = scalar_lea.vmem %s0, %s443
        %p445 = pneg %p48
        %p446 = pneg %p45
        %p447 = pneg %p69
        %p448 = pneg %p66
        %p449 = pneg %p90
        %p450 = pneg %p87
        %p451 = pneg %p111
        %p452 = pneg %p108
        %p453 = pneg %p132
        %p454 = pneg %p129
        %p455 = pneg %p153
        %p456 = pneg %p150
        %p457 = pneg %p174
        %p458 = pneg %p171
        %p459 = pneg %p195
        %p460 = pneg %p192
        %p461 = pneg %p216
        %p462 = pneg %p213
        %p463 = pneg %p237
        %p464 = pneg %p234
        %p465 = pneg %p258
        %p466 = pneg %p255
        %p467 = pneg %p279
        %p468 = pneg %p276
        %p469 = pneg %p305
        %p470 = pneg %p302
        %p471 = scmp.lt.s32.totalorder %s27, 1
        %s472 = scalar_select %p471, %s27, 1
        %s473 = smul.addr %s472, 4
        %s474 = smul.addr %s473, 8
        %s475 = scalar_lea.vmem %s12, %s474
        %p476 = pneg %p331
        %p477 = pneg %p328
        %p478 = scmp.lt.s32.totalorder %s27, 1
        %s479 = scalar_select %p478, %s27, 1
        %s480 = smul.addr %s479, 2
        %s481 = smul.addr %s480, 8
        %s482 = scalar_lea.vmem %s13, %s481
        %p483 = scmp.lt.s32.totalorder %s27, 1
        %s484 = scalar_select %p483, %s27, 1
        %s485 = smul.addr %s484, 2
        %s486 = smul.addr %s485, 8
        %s487 = scalar_lea.vmem %s0, %s486
        %p488 = scmp.lt.s32.totalorder %s27, 1
        %s489 = scalar_select %p488, %s27, 1
        %s490 = smul.addr %s489, 4
        %s491 = smul.addr %s490, 8
        %s492 = scalar_lea.vmem %s12, %s491
        %p493 = scmp.lt.s32.totalorder %s27, 1
        %s494 = scalar_select %p493, %s27, 1
        %s495 = smul.addr %s494, 2
        %s496 = smul.addr %s495, 8
        %s497 = scalar_lea.vmem %s13, %s496
        %v498 = vld [vmem:[%s487] sm:$0xff]
        %v499 = vld [vmem:[%s487 + $0x8] sm:$0xff]
        %v500 = vld [vmem:[%s2] sm:$0x1]
        %v501 = vld [vmem:[%s3] sm:$0x1]
        %vm504 = vcmask 1040384
        %v505 = vrot.slane %v498, 7
        %v506 = vrot.slane %v499, 7
        %v507 = vsel %vm504, %v505, %v506
        %v510 = vsel %vm504, 0.0, %v505
        %v511 = vsel %vm504, %v506, 0.0
        %v512 = vld [vmem:[#allocation2] sm:$0xff]
        %v513 = vld [vmem:[#allocation2 + $0x8] sm:$0xff]
        %v514 = vld [vmem:[#allocation2 + $0x10] sm:$0xff]
        %v515 = vld [vmem:[#allocation2 + $0x18] sm:$0xff]
        %v516 = vld [vmem:[#allocation2 + $0x20] sm:$0xff]
        %v517 = vld [vmem:[#allocation2 + $0x28] sm:$0xff]
        %v518 = vld [vmem:[#allocation2 + $0x30] sm:$0xff]
        %v519 = vld [vmem:[#allocation2 + $0x38] sm:$0xff]
        %s520 = scalar_lea.vmem [#allocation2], 64
        %v521 = vld [vmem:[%s520] sm:$0xff]
        %v522 = vld [vmem:[%s520 + $0x8] sm:$0xff]
        %v523 = vld [vmem:[%s520 + $0x10] sm:$0xff]
        %v524 = vld [vmem:[%s520 + $0x18] sm:$0xff]
        %v525 = vld [vmem:[%s520 + $0x20] sm:$0xff]
        %v526 = vld [vmem:[%s520 + $0x28] sm:$0xff]
        %v527 = vld [vmem:[%s520 + $0x30] sm:$0xff]
        %v528 = vld [vmem:[%s520 + $0x38] sm:$0xff]
        %vm529 = vcmask 523264
        %v530 = vsel %vm529, %v498, 0
        %v532 = vsel %vm529, %v499, 0
        %534 = vmatprep.subr.mxu0 0.0
        %535 = vmatpush1.msra.mxu0 %v521
        %536 = vmatprep.subr.mxu0 0.0
        %537 = vmatpush1.msra.mxu0 %v522
        %538 = vmatprep.subr.mxu0 0.0
        %539 = vmatpush1.msra.mxu0 %v523
        %540 = vmatprep.subr.mxu0 0.0
        %541 = vmatpush1.msra.mxu0 %v524
        %542 = vmatprep.subr.mxu0 0.0
        %543 = vmatpush1.msra.mxu0 %v525
        %544 = vmatprep.subr.mxu0 0.0
        %545 = vmatpush1.msra.mxu0 %v526
        %546 = vmatprep.subr.mxu0 0.0
        %547 = vmatpush1.msra.mxu0 %v527
        %548 = vmatprep.subr.mxu0 0.0
        %549 = vmatpush1.msra.mxu0 %v528
        %550 = vmatprep.subr.mxu0 0.0
        %551 = vmatpush1.msra.mxu0 0.0
        %552 = vmatprep.subr.mxu0 0.0
        %553 = vmatpush1.msra.mxu0 0.0
        %554 = vmatprep.subr.mxu0 0.0
        %555 = vmatpush1.msra.mxu0 0.0
        %556 = vmatprep.subr.mxu0 0.0
        %557 = vmatpush1.msra.mxu0 0.0
        %558 = vmatprep.subr.mxu0 0.0
        %559 = vmatpush1.msra.mxu0 0.0
        %560 = vmatprep.subr.mxu0 0.0
        %561 = vmatpush1.msra.mxu0 0.0
        %562 = vmatprep.subr.mxu0 0.0
        %563 = vmatpush1.msra.mxu0 0.0
        %564 = vmatprep.subr.mxu0 0.0
        %565 = vmatpush1.msra.mxu0 0.0
        %566 = vmatprep.subr.mxu0 0.0
        %567 = vmatpush1.msra.mxu0 0.0
        %568 = vmatprep.subr.mxu0 0.0
        %569 = vmatpush1.msra.mxu0 0.0
        %570 = vmatprep.subr.mxu0 0.0
        %571 = vmatpush1.msra.mxu0 0.0
        %572 = vmatprep.subr.mxu0 0.0
        %573 = vmatpush1.msra.mxu0 0.0
        %574 = vmatprep.subr.mxu0 0.0
        %575 = vmatpush1.msra.mxu0 0.0
        %576 = vmatprep.subr.mxu0 0.0
        %577 = vmatpush1.msra.mxu0 0.0
        %578 = vmatprep.subr.mxu0 0.0
        %579 = vmatpush1.msra.mxu0 0.0
        %580 = vmatprep.subr.mxu0 0.0
        %581 = vmatpush1.msra.mxu0 0.0
        %582 = vmatprep.subr.mxu0 0.0
        %583 = vmatpush1.msra.mxu0 0.0
        %584 = vmatprep.subr.mxu0 0.0
        %585 = vmatpush1.msra.mxu0 0.0
        %586 = vmatprep.subr.mxu0 0.0
        %587 = vmatpush1.msra.mxu0 0.0
        %588 = vmatprep.subr.mxu0 0.0
        %589 = vmatpush1.msra.mxu0 0.0
        %590 = vmatprep.subr.mxu0 0.0
        %591 = vmatpush1.msra.mxu0 0.0
        %592 = vmatprep.subr.mxu0 0.0
        %593 = vmatpush1.msra.mxu0 0.0
        %594 = vmatprep.subr.mxu0 0.0
        %595 = vmatpush1.msra.mxu0 0.0
        %596 = vmatprep.subr.mxu0 0.0
        %597 = vmatpush1.msra.mxu0 0.0
        %598 = vmatprep.mubr.f32.mxu0 0.0
        %599 = vmatmul.mubr.f32.gmra.mrb[0].mxu0 %v530
        %v600 = vpop.f32.mrb[0].mxu0
        %v601 = vadd.f32 0.0, %v600
        %v602 = vpop.f32.mrb[0].mxu0
        %603 = vmatprep.mubr.f32.mxu0 0.0
        %604 = vmatmul.mubr.f32.gmra.mrb[0].mxu0 %v532
        %v605 = vpop.f32.mrb[0].mxu0
        %v606 = vadd.f32 0.0, %v605
        %v607 = vpop.f32.mrb[0].mxu0
        %608 = vdwg.mxu0
        %v610 = vsel %vm529, %v510, 0
        %v612 = vsel %vm529, %v507, 0
        %614 = vmatprep.subr.mxu0 0.0
        %615 = vmatpush1.msra.mxu0 %v512
        %616 = vmatprep.subr.mxu0 0.0
        %617 = vmatpush1.msra.mxu0 %v513
        %618 = vmatprep.subr.mxu0 0.0
        %619 = vmatpush1.msra.mxu0 %v514
        %620 = vmatprep.subr.mxu0 0.0
        %621 = vmatpush1.msra.mxu0 %v515
        %622 = vmatprep.subr.mxu0 0.0
        %623 = vmatpush1.msra.mxu0 %v516
        %624 = vmatprep.subr.mxu0 0.0
        %625 = vmatpush1.msra.mxu0 %v517
        %626 = vmatprep.subr.mxu0 0.0
        %627 = vmatpush1.msra.mxu0 %v518
        %628 = vmatprep.subr.mxu0 0.0
        %629 = vmatpush1.msra.mxu0 %v519
        %630 = vmatprep.subr.mxu0 0.0
        %631 = vmatpush1.msra.mxu0 0.0
        %632 = vmatprep.subr.mxu0 0.0
        %633 = vmatpush1.msra.mxu0 0.0
        %634 = vmatprep.subr.mxu0 0.0
        %635 = vmatpush1.msra.mxu0 0.0
        %636 = vmatprep.subr.mxu0 0.0
        %637 = vmatpush1.msra.mxu0 0.0
        %638 = vmatprep.subr.mxu0 0.0
        %639 = vmatpush1.msra.mxu0 0.0
        %640 = vmatprep.subr.mxu0 0.0
        %641 = vmatpush1.msra.mxu0 0.0
        %642 = vmatprep.subr.mxu0 0.0
        %643 = vmatpush1.msra.mxu0 0.0
        %644 = vmatprep.subr.mxu0 0.0
        %645 = vmatpush1.msra.mxu0 0.0
        %646 = vmatprep.subr.mxu0 0.0
        %647 = vmatpush1.msra.mxu0 0.0
        %648 = vmatprep.subr.mxu0 0.0
        %649 = vmatpush1.msra.mxu0 0.0
        %650 = vmatprep.subr.mxu0 0.0
        %651 = vmatpush1.msra.mxu0 0.0
        %652 = vmatprep.subr.mxu0 0.0
        %653 = vmatpush1.msra.mxu0 0.0
        %654 = vmatprep.subr.mxu0 0.0
        %655 = vmatpush1.msra.mxu0 0.0
        %656 = vmatprep.subr.mxu0 0.0
        %657 = vmatpush1.msra.mxu0 0.0
        %658 = vmatprep.subr.mxu0 0.0
        %659 = vmatpush1.msra.mxu0 0.0
        %660 = vmatprep.subr.mxu0 0.0
        %661 = vmatpush1.msra.mxu0 0.0
        %662 = vmatprep.subr.mxu0 0.0
        %663 = vmatpush1.msra.mxu0 0.0
        %664 = vmatprep.subr.mxu0 0.0
        %665 = vmatpush1.msra.mxu0 0.0
        %666 = vmatprep.subr.mxu0 0.0
        %667 = vmatpush1.msra.mxu0 0.0
        %668 = vmatprep.subr.mxu0 0.0
        %669 = vmatpush1.msra.mxu0 0.0
        %670 = vmatprep.subr.mxu0 0.0
        %671 = vmatpush1.msra.mxu0 0.0
        %672 = vmatprep.subr.mxu0 0.0
        %673 = vmatpush1.msra.mxu0 0.0
        %674 = vmatprep.subr.mxu0 0.0
        %675 = vmatpush1.msra.mxu0 0.0
        %676 = vmatprep.subr.mxu0 0.0
        %677 = vmatpush1.msra.mxu0 0.0
        %678 = vmatprep.mubr.f32.mxu0 0.0
        %679 = vmatmul.mubr.f32.gmra.mrb[0].mxu0 %v610
        %v680 = vpop.f32.mrb[0].mxu0
        %v681 = vadd.f32 %v601, %v680
        %v682 = vpop.f32.mrb[0].mxu0
        %683 = vmatprep.mubr.f32.mxu0 0.0
        %684 = vmatmul.mubr.f32.gmra.mrb[0].mxu0 %v612
        %v685 = vpop.f32.mrb[0].mxu0
        %v686 = vadd.f32 %v606, %v685
        %v687 = vpop.f32.mrb[0].mxu0
        %688 = vdwg.mxu0
        %s689 = scalar_lea.vmem [#allocation2], 128
        %v690 = vld [vmem:[%s689] sm:$0xff]
        %v691 = vld [vmem:[%s689 + $0x8] sm:$0xff]
        %v692 = vld [vmem:[%s689 + $0x10] sm:$0xff]
        %v693 = vld [vmem:[%s689 + $0x18] sm:$0xff]
        %v694 = vld [vmem:[%s689 + $0x20] sm:$0xff]
        %v695 = vld [vmem:[%s689 + $0x28] sm:$0xff]
        %v696 = vld [vmem:[%s689 + $0x30] sm:$0xff]
        %v697 = vld [vmem:[%s689 + $0x38] sm:$0xff]
        %vm699 = vcmask 1045504
        %v700 = vrot.slane %v510, 2
        %v701 = vrot.slane %v507, 2
        %v702 = vsel %vm699, %v700, %v701
        %v703 = vrot.slane %v511, 2
        %v704 = vsel %vm699, %v701, %v703
        %v705 = vsel %vm529, %v702, 0
        %v707 = vsel %vm529, %v704, 0
        %709 = vmatprep.subr.mxu0 0.0
        %710 = vmatpush1.msra.mxu0 %v690
        %711 = vmatprep.subr.mxu0 0.0
        %712 = vmatpush1.msra.mxu0 %v691
        %713 = vmatprep.subr.mxu0 0.0
        %714 = vmatpush1.msra.mxu0 %v692
        %715 = vmatprep.subr.mxu0 0.0
        %716 = vmatpush1.msra.mxu0 %v693
        %717 = vmatprep.subr.mxu0 0.0
        %718 = vmatpush1.msra.mxu0 %v694
        %719 = vmatprep.subr.mxu0 0.0
        %720 = vmatpush1.msra.mxu0 %v695
        %721 = vmatprep.subr.mxu0 0.0
        %722 = vmatpush1.msra.mxu0 %v696
        %723 = vmatprep.subr.mxu0 0.0
        %724 = vmatpush1.msra.mxu0 %v697
        %725 = vmatprep.subr.mxu0 0.0
        %726 = vmatpush1.msra.mxu0 0.0
        %727 = vmatprep.subr.mxu0 0.0
        %728 = vmatpush1.msra.mxu0 0.0
        %729 = vmatprep.subr.mxu0 0.0
        %730 = vmatpush1.msra.mxu0 0.0
        %731 = vmatprep.subr.mxu0 0.0
        %732 = vmatpush1.msra.mxu0 0.0
        %733 = vmatprep.subr.mxu0 0.0
        %734 = vmatpush1.msra.mxu0 0.0
        %735 = vmatprep.subr.mxu0 0.0
        %736 = vmatpush1.msra.mxu0 0.0
        %737 = vmatprep.subr.mxu0 0.0
        %738 = vmatpush1.msra.mxu0 0.0
        %739 = vmatprep.subr.mxu0 0.0
        %740 = vmatpush1.msra.mxu0 0.0
        %741 = vmatprep.subr.mxu0 0.0
        %742 = vmatpush1.msra.mxu0 0.0
        %743 = vmatprep.subr.mxu0 0.0
        %744 = vmatpush1.msra.mxu0 0.0
        %745 = vmatprep.subr.mxu0 0.0
        %746 = vmatpush1.msra.mxu0 0.0
        %747 = vmatprep.subr.mxu0 0.0
        %748 = vmatpush1.msra.mxu0 0.0
        %749 = vmatprep.subr.mxu0 0.0
        %750 = vmatpush1.msra.mxu0 0.0
        %751 = vmatprep.subr.mxu0 0.0
        %752 = vmatpush1.msra.mxu0 0.0
        %753 = vmatprep.subr.mxu0 0.0
        %754 = vmatpush1.msra.mxu0 0.0
        %755 = vmatprep.subr.mxu0 0.0
        %756 = vmatpush1.msra.mxu0 0.0
        %757 = vmatprep.subr.mxu0 0.0
        %758 = vmatpush1.msra.mxu0 0.0
        %759 = vmatprep.subr.mxu0 0.0
        %760 = vmatpush1.msra.mxu0 0.0
        %761 = vmatprep.subr.mxu0 0.0
        %762 = vmatpush1.msra.mxu0 0.0
        %763 = vmatprep.subr.mxu0 0.0
        %764 = vmatpush1.msra.mxu0 0.0
        %765 = vmatprep.subr.mxu0 0.0
        %766 = vmatpush1.msra.mxu0 0.0
        %767 = vmatprep.subr.mxu0 0.0
        %768 = vmatpush1.msra.mxu0 0.0
        %769 = vmatprep.subr.mxu0 0.0
        %770 = vmatpush1.msra.mxu0 0.0
        %771 = vmatprep.subr.mxu0 0.0
        %772 = vmatpush1.msra.mxu0 0.0
        %773 = vmatprep.mubr.f32.mxu0 0.0
        %774 = vmatmul.mubr.f32.gmra.mrb[0].mxu0 %v705
        %v775 = vpop.f32.mrb[0].mxu0
        %v776 = vadd.f32 0.0, %v775
        %v777 = vpop.f32.mrb[0].mxu0
        %778 = vmatprep.mubr.f32.mxu0 0.0
        %779 = vmatmul.mubr.f32.gmra.mrb[0].mxu0 %v707
        %v780 = vpop.f32.mrb[0].mxu0
        %v781 = vadd.f32 0.0, %v780
        %v782 = vpop.f32.mrb[0].mxu0
        %783 = vdwg.mxu0
        %v784 = vadd.f32 %v681, %v776
        %v785 = vadd.f32 %v686, %v781
        %v787 = vlaneseq
        %v788 = vshrl.u32 %v787, 7
        %v789 = vsub.s32 0, %v788
        %v790 = vrot.slane %v500, %v789
        %v792 = vmul.f32 %v784, %v790
        %v793 = vmul.f32 %v785, %v790
        %v795 = vlaneseq
        %v796 = vshrl.u32 %v795, 7
        %v797 = vsub.s32 0, %v796
        %v798 = vrot.slane %v501, %v797
        %v800 = vadd.f32 %v792, %v798
        %v801 = vadd.f32 %v793, %v798
        %v802 = vmax.f32 %v800, 0.0
        %v803 = vmax.f32 %v801, 0.0
        %v804 = vld [vmem:[%s5] sm:$0x1]
        %v805 = vld [vmem:[%s6] sm:$0x1]
        %v808 = vrot.slane %v802, 7
        %v809 = vrot.slane %v803, 7
        %v810 = vsel %vm504, %v808, %v809
        %v814 = vsel %vm504, 0.0, %v808
        %v815 = vsel %vm504, %v809, 0.0
        %v816 = vld [vmem:[%s4] sm:$0xff]
        %v817 = vld [vmem:[%s4 + $0x8] sm:$0xff]
        %v818 = vld [vmem:[%s4 + $0x10] sm:$0xff]
        %v819 = vld [vmem:[%s4 + $0x18] sm:$0xff]
        %v820 = vld [vmem:[%s4 + $0x20] sm:$0xff]
        %v821 = vld [vmem:[%s4 + $0x28] sm:$0xff]
        %v822 = vld [vmem:[%s4 + $0x30] sm:$0xff]
        %v823 = vld [vmem:[%s4 + $0x38] sm:$0xff]
        %v824 = vld [vmem:[%s4 + $0x40] sm:$0xff]
        %v825 = vld [vmem:[%s4 + $0x48] sm:$0xff]
        %v826 = vld [vmem:[%s4 + $0x50] sm:$0xff]
        %v827 = vld [vmem:[%s4 + $0x58] sm:$0xff]
        %v828 = vld [vmem:[%s4 + $0x60] sm:$0xff]
        %v829 = vld [vmem:[%s4 + $0x68] sm:$0xff]
        %v830 = vld [vmem:[%s4 + $0x70] sm:$0xff]
        %v831 = vld [vmem:[%s4 + $0x78] sm:$0xff]
        %s832 = scalar_lea.vmem %s4, 128
        %v833 = vld [vmem:[%s832] sm:$0xff]
        %v834 = vld [vmem:[%s832 + $0x8] sm:$0xff]
        %v835 = vld [vmem:[%s832 + $0x10] sm:$0xff]
        %v836 = vld [vmem:[%s832 + $0x18] sm:$0xff]
        %v837 = vld [vmem:[%s832 + $0x20] sm:$0xff]
        %v838 = vld [vmem:[%s832 + $0x28] sm:$0xff]
        %v839 = vld [vmem:[%s832 + $0x30] sm:$0xff]
        %v840 = vld [vmem:[%s832 + $0x38] sm:$0xff]
        %v841 = vld [vmem:[%s832 + $0x40] sm:$0xff]
        %v842 = vld [vmem:[%s832 + $0x48] sm:$0xff]
        %v843 = vld [vmem:[%s832 + $0x50] sm:$0xff]
        %v844 = vld [vmem:[%s832 + $0x58] sm:$0xff]
        %v845 = vld [vmem:[%s832 + $0x60] sm:$0xff]
        %v846 = vld [vmem:[%s832 + $0x68] sm:$0xff]
        %v847 = vld [vmem:[%s832 + $0x70] sm:$0xff]
        %v848 = vld [vmem:[%s832 + $0x78] sm:$0xff]
        %849 = vmatprep.subr.mxu0 0.0
        %850 = vmatpush1.msra.mxu0 %v833
        %851 = vmatprep.subr.mxu0 0.0
        %852 = vmatpush1.msra.mxu0 %v834
        %853 = vmatprep.subr.mxu0 0.0
        %854 = vmatpush1.msra.mxu0 %v835
        %855 = vmatprep.subr.mxu0 0.0
        %856 = vmatpush1.msra.mxu0 %v836
        %857 = vmatprep.subr.mxu0 0.0
        %858 = vmatpush1.msra.mxu0 %v837
        %859 = vmatprep.subr.mxu0 0.0
        %860 = vmatpush1.msra.mxu0 %v838
        %861 = vmatprep.subr.mxu0 0.0
        %862 = vmatpush1.msra.mxu0 %v839
        %863 = vmatprep.subr.mxu0 0.0
        %864 = vmatpush1.msra.mxu0 %v840
        %865 = vmatprep.subr.mxu0 0.0
        %866 = vmatpush1.msra.mxu0 %v841
        %867 = vmatprep.subr.mxu0 0.0
        %868 = vmatpush1.msra.mxu0 %v842
        %869 = vmatprep.subr.mxu0 0.0
        %870 = vmatpush1.msra.mxu0 %v843
        %871 = vmatprep.subr.mxu0 0.0
        %872 = vmatpush1.msra.mxu0 %v844
        %873 = vmatprep.subr.mxu0 0.0
        %874 = vmatpush1.msra.mxu0 %v845
        %875 = vmatprep.subr.mxu0 0.0
        %876 = vmatpush1.msra.mxu0 %v846
        %877 = vmatprep.subr.mxu0 0.0
        %878 = vmatpush1.msra.mxu0 %v847
        %879 = vmatprep.subr.mxu0 0.0
        %880 = vmatpush1.msra.mxu0 %v848
        %881 = vmatprep.subr.mxu0 0.0
        %882 = vmatpush1.msra.mxu0 0.0
        %883 = vmatprep.subr.mxu0 0.0
        %884 = vmatpush1.msra.mxu0 0.0
        %885 = vmatprep.subr.mxu0 0.0
        %886 = vmatpush1.msra.mxu0 0.0
        %887 = vmatprep.subr.mxu0 0.0
        %888 = vmatpush1.msra.mxu0 0.0
        %889 = vmatprep.subr.mxu0 0.0
        %890 = vmatpush1.msra.mxu0 0.0
        %891 = vmatprep.subr.mxu0 0.0
        %892 = vmatpush1.msra.mxu0 0.0
        %893 = vmatprep.subr.mxu0 0.0
        %894 = vmatpush1.msra.mxu0 0.0
        %895 = vmatprep.subr.mxu0 0.0
        %896 = vmatpush1.msra.mxu0 0.0
        %897 = vmatprep.subr.mxu0 0.0
        %898 = vmatpush1.msra.mxu0 0.0
        %899 = vmatprep.subr.mxu0 0.0
        %900 = vmatpush1.msra.mxu0 0.0
        %901 = vmatprep.subr.mxu0 0.0
        %902 = vmatpush1.msra.mxu0 0.0
        %903 = vmatprep.subr.mxu0 0.0
        %904 = vmatpush1.msra.mxu0 0.0
        %905 = vmatprep.subr.mxu0 0.0
        %906 = vmatpush1.msra.mxu0 0.0
        %907 = vmatprep.subr.mxu0 0.0
        %908 = vmatpush1.msra.mxu0 0.0
        %909 = vmatprep.subr.mxu0 0.0
        %910 = vmatpush1.msra.mxu0 0.0
        %911 = vmatprep.subr.mxu0 0.0
        %912 = vmatpush1.msra.mxu0 0.0
        %913 = vmatprep.mubr.f32.mxu0 0.0
        %914 = vmatmul.mubr.f32.gmra.mrb[0].mxu0 %v802
        %v915 = vpop.f32.mrb[0].mxu0
        %v916 = vadd.f32 0.0, %v915
        %v917 = vpop.f32.mrb[0].mxu0
        %918 = vmatprep.mubr.f32.mxu0 0.0
        %919 = vmatmul.mubr.f32.gmra.mrb[0].mxu0 %v803
        %v920 = vpop.f32.mrb[0].mxu0
        %v921 = vadd.f32 0.0, %v920
        %v922 = vpop.f32.mrb[0].mxu0
        %923 = vdwg.mxu0
        %924 = vmatprep.subr.mxu0 0.0
        %925 = vmatpush1.msra.mxu0 %v816
        %926 = vmatprep.subr.mxu0 0.0
        %927 = vmatpush1.msra.mxu0 %v817
        %928 = vmatprep.subr.mxu0 0.0
        %929 = vmatpush1.msra.mxu0 %v818
        %930 = vmatprep.subr.mxu0 0.0
        %931 = vmatpush1.msra.mxu0 %v819
        %932 = vmatprep.subr.mxu0 0.0
        %933 = vmatpush1.msra.mxu0 %v820
        %934 = vmatprep.subr.mxu0 0.0
        %935 = vmatpush1.msra.mxu0 %v821
        %936 = vmatprep.subr.mxu0 0.0
        %937 = vmatpush1.msra.mxu0 %v822
        %938 = vmatprep.subr.mxu0 0.0
        %939 = vmatpush1.msra.mxu0 %v823
        %940 = vmatprep.subr.mxu0 0.0
        %941 = vmatpush1.msra.mxu0 %v824
        %942 = vmatprep.subr.mxu0 0.0
        %943 = vmatpush1.msra.mxu0 %v825
        %944 = vmatprep.subr.mxu0 0.0
        %945 = vmatpush1.msra.mxu0 %v826
        %946 = vmatprep.subr.mxu0 0.0
        %947 = vmatpush1.msra.mxu0 %v827
        %948 = vmatprep.subr.mxu0 0.0
        %949 = vmatpush1.msra.mxu0 %v828
        %950 = vmatprep.subr.mxu0 0.0
        %951 = vmatpush1.msra.mxu0 %v829
        %952 = vmatprep.subr.mxu0 0.0
        %953 = vmatpush1.msra.mxu0 %v830
        %954 = vmatprep.subr.mxu0 0.0
        %955 = vmatpush1.msra.mxu0 %v831
        %956 = vmatprep.subr.mxu0 0.0
        %957 = vmatpush1.msra.mxu0 0.0
        %958 = vmatprep.subr.mxu0 0.0
        %959 = vmatpush1.msra.mxu0 0.0
        %960 = vmatprep.subr.mxu0 0.0
        %961 = vmatpush1.msra.mxu0 0.0
        %962 = vmatprep.subr.mxu0 0.0
        %963 = vmatpush1.msra.mxu0 0.0
        %964 = vmatprep.subr.mxu0 0.0
        %965 = vmatpush1.msra.mxu0 0.0
        %966 = vmatprep.subr.mxu0 0.0
        %967 = vmatpush1.msra.mxu0 0.0
        %968 = vmatprep.subr.mxu0 0.0
        %969 = vmatpush1.msra.mxu0 0.0
        %970 = vmatprep.subr.mxu0 0.0
        %971 = vmatpush1.msra.mxu0 0.0
        %972 = vmatprep.subr.mxu0 0.0
        %973 = vmatpush1.msra.mxu0 0.0
        %974 = vmatprep.subr.mxu0 0.0
        %975 = vmatpush1.msra.mxu0 0.0
        %976 = vmatprep.subr.mxu0 0.0
        %977 = vmatpush1.msra.mxu0 0.0
        %978 = vmatprep.subr.mxu0 0.0
        %979 = vmatpush1.msra.mxu0 0.0
        %980 = vmatprep.subr.mxu0 0.0
        %981 = vmatpush1.msra.mxu0 0.0
        %982 = vmatprep.subr.mxu0 0.0
        %983 = vmatpush1.msra.mxu0 0.0
        %984 = vmatprep.subr.mxu0 0.0
        %985 = vmatpush1.msra.mxu0 0.0
        %986 = vmatprep.subr.mxu0 0.0
        %987 = vmatpush1.msra.mxu0 0.0
        %988 = vmatprep.mubr.f32.mxu0 0.0
        %989 = vmatmul.mubr.f32.gmra.mrb[0].mxu0 %v814
        %v990 = vpop.f32.mrb[0].mxu0
        %v991 = vadd.f32 %v916, %v990
        %v992 = vpop.f32.mrb[0].mxu0
        %993 = vmatprep.mubr.f32.mxu0 0.0
        %994 = vmatmul.mubr.f32.gmra.mrb[0].mxu0 %v810
        %v995 = vpop.f32.mrb[0].mxu0
        %v996 = vadd.f32 %v921, %v995
        %v997 = vpop.f32.mrb[0].mxu0
        %998 = vdwg.mxu0
        %s999 = scalar_lea.vmem %s4, 256
        %v1000 = vld [vmem:[%s999] sm:$0xff]
        %v1001 = vld [vmem:[%s999 + $0x8] sm:$0xff]
        %v1002 = vld [vmem:[%s999 + $0x10] sm:$0xff]
        %v1003 = vld [vmem:[%s999 + $0x18] sm:$0xff]
        %v1004 = vld [vmem:[%s999 + $0x20] sm:$0xff]
        %v1005 = vld [vmem:[%s999 + $0x28] sm:$0xff]
        %v1006 = vld [vmem:[%s999 + $0x30] sm:$0xff]
        %v1007 = vld [vmem:[%s999 + $0x38] sm:$0xff]
        %v1008 = vld [vmem:[%s999 + $0x40] sm:$0xff]
        %v1009 = vld [vmem:[%s999 + $0x48] sm:$0xff]
        %v1010 = vld [vmem:[%s999 + $0x50] sm:$0xff]
        %v1011 = vld [vmem:[%s999 + $0x58] sm:$0xff]
        %v1012 = vld [vmem:[%s999 + $0x60] sm:$0xff]
        %v1013 = vld [vmem:[%s999 + $0x68] sm:$0xff]
        %v1014 = vld [vmem:[%s999 + $0x70] sm:$0xff]
        %v1015 = vld [vmem:[%s999 + $0x78] sm:$0xff]
        %v1018 = vrot.slane %v814, 2
        %v1019 = vrot.slane %v810, 2
        %v1020 = vsel %vm699, %v1018, %v1019
        %v1021 = vrot.slane %v815, 2
        %v1022 = vsel %vm699, %v1019, %v1021
        %1025 = vmatprep.subr.mxu0 0.0
        %1026 = vmatpush1.msra.mxu0 %v1000
        %1027 = vmatprep.subr.mxu0 0.0
        %1028 = vmatpush1.msra.mxu0 %v1001
        %1029 = vmatprep.subr.mxu0 0.0
        %1030 = vmatpush1.msra.mxu0 %v1002
        %1031 = vmatprep.subr.mxu0 0.0
        %1032 = vmatpush1.msra.mxu0 %v1003
        %1033 = vmatprep.subr.mxu0 0.0
        %1034 = vmatpush1.msra.mxu0 %v1004
        %1035 = vmatprep.subr.mxu0 0.0
        %1036 = vmatpush1.msra.mxu0 %v1005
        %1037 = vmatprep.subr.mxu0 0.0
        %1038 = vmatpush1.msra.mxu0 %v1006
        %1039 = vmatprep.subr.mxu0 0.0
        %1040 = vmatpush1.msra.mxu0 %v1007
        %1041 = vmatprep.subr.mxu0 0.0
        %1042 = vmatpush1.msra.mxu0 %v1008
        %1043 = vmatprep.subr.mxu0 0.0
        %1044 = vmatpush1.msra.mxu0 %v1009
        %1045 = vmatprep.subr.mxu0 0.0
        %1046 = vmatpush1.msra.mxu0 %v1010
        %1047 = vmatprep.subr.mxu0 0.0
        %1048 = vmatpush1.msra.mxu0 %v1011
        %1049 = vmatprep.subr.mxu0 0.0
        %1050 = vmatpush1.msra.mxu0 %v1012
        %1051 = vmatprep.subr.mxu0 0.0
        %1052 = vmatpush1.msra.mxu0 %v1013
        %1053 = vmatprep.subr.mxu0 0.0
        %1054 = vmatpush1.msra.mxu0 %v1014
        %1055 = vmatprep.subr.mxu0 0.0
        %1056 = vmatpush1.msra.mxu0 %v1015
        %1057 = vmatprep.subr.mxu0 0.0
        %1058 = vmatpush1.msra.mxu0 0.0
        %1059 = vmatprep.subr.mxu0 0.0
        %1060 = vmatpush1.msra.mxu0 0.0
        %1061 = vmatprep.subr.mxu0 0.0
        %1062 = vmatpush1.msra.mxu0 0.0
        %1063 = vmatprep.subr.mxu0 0.0
        %1064 = vmatpush1.msra.mxu0 0.0
        %1065 = vmatprep.subr.mxu0 0.0
        %1066 = vmatpush1.msra.mxu0 0.0
        %1067 = vmatprep.subr.mxu0 0.0
        %1068 = vmatpush1.msra.mxu0 0.0
        %1069 = vmatprep.subr.mxu0 0.0
        %1070 = vmatpush1.msra.mxu0 0.0
        %1071 = vmatprep.subr.mxu0 0.0
        %1072 = vmatpush1.msra.mxu0 0.0
        %1073 = vmatprep.subr.mxu0 0.0
        %1074 = vmatpush1.msra.mxu0 0.0
        %1075 = vmatprep.subr.mxu0 0.0
        %1076 = vmatpush1.msra.mxu0 0.0
        %1077 = vmatprep.subr.mxu0 0.0
        %1078 = vmatpush1.msra.mxu0 0.0
        %1079 = vmatprep.subr.mxu0 0.0
        %1080 = vmatpush1.msra.mxu0 0.0
        %1081 = vmatprep.subr.mxu0 0.0
        %1082 = vmatpush1.msra.mxu0 0.0
        %1083 = vmatprep.subr.mxu0 0.0
        %1084 = vmatpush1.msra.mxu0 0.0
        %1085 = vmatprep.subr.mxu0 0.0
        %1086 = vmatpush1.msra.mxu0 0.0
        %1087 = vmatprep.subr.mxu0 0.0
        %1088 = vmatpush1.msra.mxu0 0.0
        %1089 = vmatprep.mubr.f32.mxu0 0.0
        %1090 = vmatmul.mubr.f32.gmra.mrb[0].mxu0 %v1020
        %v1091 = vpop.f32.mrb[0].mxu0
        %v1092 = vadd.f32 0.0, %v1091
        %v1093 = vpop.f32.mrb[0].mxu0
        %1094 = vmatprep.mubr.f32.mxu0 0.0
        %1095 = vmatmul.mubr.f32.gmra.mrb[0].mxu0 %v1022
        %v1096 = vpop.f32.mrb[0].mxu0
        %v1097 = vadd.f32 0.0, %v1096
        %v1098 = vpop.f32.mrb[0].mxu0
        %1099 = vdwg.mxu0
        %v1100 = vadd.f32 %v991, %v1092
        %v1101 = vadd.f32 %v996, %v1097
        %v1103 = vlaneseq
        %v1104 = vshrl.u32 %v1103, 7
        %v1105 = vsub.s32 0, %v1104
        %v1106 = vrot.slane %v804, %v1105
        %v1108 = vmul.f32 %v1100, %v1106
        %v1109 = vmul.f32 %v1101, %v1106
        %v1111 = vlaneseq
        %v1112 = vshrl.u32 %v1111, 7
        %v1113 = vsub.s32 0, %v1112
        %v1114 = vrot.slane %v805, %v1113
        %v1116 = vadd.f32 %v1108, %v1114
        %v1117 = vadd.f32 %v1109, %v1114
        %v1118 = vmax.f32 %v1116, 0.0
        %v1119 = vmax.f32 %v1117, 0.0
        %v1120 = vld [vmem:[%s8] sm:$0x1]
        %v1121 = vld [vmem:[%s9] sm:$0x1]
        %v1124 = vrot.slane %v1118, 7
        %v1125 = vrot.slane %v1119, 7
        %v1126 = vsel %vm504, %v1124, %v1125
        %v1130 = vsel %vm504, 0.0, %v1124
        %v1131 = vsel %vm504, %v1125, 0.0
        %v1132 = vld [vmem:[#allocation4] sm:$0xff]
        %v1133 = vld [vmem:[#allocation4 + $0x8] sm:$0xff]
        %v1134 = vld [vmem:[#allocation4 + $0x10] sm:$0xff]
        %v1135 = vld [vmem:[#allocation4 + $0x18] sm:$0xff]
        %v1136 = vld [vmem:[#allocation4 + $0x20] sm:$0xff]
        %v1137 = vld [vmem:[#allocation4 + $0x28] sm:$0xff]
        %v1138 = vld [vmem:[#allocation4 + $0x30] sm:$0xff]
        %v1139 = vld [vmem:[#allocation4 + $0x38] sm:$0xff]
        %v1140 = vld [vmem:[#allocation4 + $0x40] sm:$0xff]
        %v1141 = vld [vmem:[#allocation4 + $0x48] sm:$0xff]
        %v1142 = vld [vmem:[#allocation4 + $0x50] sm:$0xff]
        %v1143 = vld [vmem:[#allocation4 + $0x58] sm:$0xff]
        %v1144 = vld [vmem:[#allocation4 + $0x60] sm:$0xff]
        %v1145 = vld [vmem:[#allocation4 + $0x68] sm:$0xff]
        %v1146 = vld [vmem:[#allocation4 + $0x70] sm:$0xff]
        %v1147 = vld [vmem:[#allocation4 + $0x78] sm:$0xff]
        %s1148 = scalar_lea.vmem [#allocation4], 128
        %v1149 = vld [vmem:[%s1148] sm:$0xff]
        %v1150 = vld [vmem:[%s1148 + $0x8] sm:$0xff]
        %v1151 = vld [vmem:[%s1148 + $0x10] sm:$0xff]
        %v1152 = vld [vmem:[%s1148 + $0x18] sm:$0xff]
        %v1153 = vld [vmem:[%s1148 + $0x20] sm:$0xff]
        %v1154 = vld [vmem:[%s1148 + $0x28] sm:$0xff]
        %v1155 = vld [vmem:[%s1148 + $0x30] sm:$0xff]
        %v1156 = vld [vmem:[%s1148 + $0x38] sm:$0xff]
        %v1157 = vld [vmem:[%s1148 + $0x40] sm:$0xff]
        %v1158 = vld [vmem:[%s1148 + $0x48] sm:$0xff]
        %v1159 = vld [vmem:[%s1148 + $0x50] sm:$0xff]
        %v1160 = vld [vmem:[%s1148 + $0x58] sm:$0xff]
        %v1161 = vld [vmem:[%s1148 + $0x60] sm:$0xff]
        %v1162 = vld [vmem:[%s1148 + $0x68] sm:$0xff]
        %v1163 = vld [vmem:[%s1148 + $0x70] sm:$0xff]
        %v1164 = vld [vmem:[%s1148 + $0x78] sm:$0xff]
        %1165 = vmatprep.subr.mxu0 0.0
        %1166 = vmatpush1.msra.mxu0 %v1149
        %1167 = vmatprep.subr.mxu0 0.0
        %1168 = vmatpush1.msra.mxu0 %v1150
        %1169 = vmatprep.subr.mxu0 0.0
        %1170 = vmatpush1.msra.mxu0 %v1151
        %1171 = vmatprep.subr.mxu0 0.0
        %1172 = vmatpush1.msra.mxu0 %v1152
        %1173 = vmatprep.subr.mxu0 0.0
        %1174 = vmatpush1.msra.mxu0 %v1153
        %1175 = vmatprep.subr.mxu0 0.0
        %1176 = vmatpush1.msra.mxu0 %v1154
        %1177 = vmatprep.subr.mxu0 0.0
        %1178 = vmatpush1.msra.mxu0 %v1155
        %1179 = vmatprep.subr.mxu0 0.0
        %1180 = vmatpush1.msra.mxu0 %v1156
        %1181 = vmatprep.subr.mxu0 0.0
        %1182 = vmatpush1.msra.mxu0 %v1157
        %1183 = vmatprep.subr.mxu0 0.0
        %1184 = vmatpush1.msra.mxu0 %v1158
        %1185 = vmatprep.subr.mxu0 0.0
        %1186 = vmatpush1.msra.mxu0 %v1159
        %1187 = vmatprep.subr.mxu0 0.0
        %1188 = vmatpush1.msra.mxu0 %v1160
        %1189 = vmatprep.subr.mxu0 0.0
        %1190 = vmatpush1.msra.mxu0 %v1161
        %1191 = vmatprep.subr.mxu0 0.0
        %1192 = vmatpush1.msra.mxu0 %v1162
        %1193 = vmatprep.subr.mxu0 0.0
        %1194 = vmatpush1.msra.mxu0 %v1163
        %1195 = vmatprep.subr.mxu0 0.0
        %1196 = vmatpush1.msra.mxu0 %v1164
        %1197 = vmatprep.subr.mxu0 0.0
        %1198 = vmatpush1.msra.mxu0 0.0
        %1199 = vmatprep.subr.mxu0 0.0
        %1200 = vmatpush1.msra.mxu0 0.0
        %1201 = vmatprep.subr.mxu0 0.0
        %1202 = vmatpush1.msra.mxu0 0.0
        %1203 = vmatprep.subr.mxu0 0.0
        %1204 = vmatpush1.msra.mxu0 0.0
        %1205 = vmatprep.subr.mxu0 0.0
        %1206 = vmatpush1.msra.mxu0 0.0
        %1207 = vmatprep.subr.mxu0 0.0
        %1208 = vmatpush1.msra.mxu0 0.0
        %1209 = vmatprep.subr.mxu0 0.0
        %1210 = vmatpush1.msra.mxu0 0.0
        %1211 = vmatprep.subr.mxu0 0.0
        %1212 = vmatpush1.msra.mxu0 0.0
        %1213 = vmatprep.subr.mxu0 0.0
        %1214 = vmatpush1.msra.mxu0 0.0
        %1215 = vmatprep.subr.mxu0 0.0
        %1216 = vmatpush1.msra.mxu0 0.0
        %1217 = vmatprep.subr.mxu0 0.0
        %1218 = vmatpush1.msra.mxu0 0.0
        %1219 = vmatprep.subr.mxu0 0.0
        %1220 = vmatpush1.msra.mxu0 0.0
        %1221 = vmatprep.subr.mxu0 0.0
        %1222 = vmatpush1.msra.mxu0 0.0
        %1223 = vmatprep.subr.mxu0 0.0
        %1224 = vmatpush1.msra.mxu0 0.0
        %1225 = vmatprep.subr.mxu0 0.0
        %1226 = vmatpush1.msra.mxu0 0.0
        %1227 = vmatprep.subr.mxu0 0.0
        %1228 = vmatpush1.msra.mxu0 0.0
        %1229 = vmatprep.mubr.f32.mxu0 0.0
        %1230 = vmatmul.mubr.f32.gmra.mrb[0].mxu0 %v1118
        %v1231 = vpop.f32.mrb[0].mxu0
        %v1232 = vadd.f32 0.0, %v1231
        %v1233 = vpop.f32.mrb[0].mxu0
        %1234 = vmatprep.mubr.f32.mxu0 0.0
        %1235 = vmatmul.mubr.f32.gmra.mrb[0].mxu0 %v1119
        %v1236 = vpop.f32.mrb[0].mxu0
        %v1237 = vadd.f32 0.0, %v1236
        %v1238 = vpop.f32.mrb[0].mxu0
        %1239 = vdwg.mxu0
        %1240 = vmatprep.subr.mxu0 0.0
        %1241 = vmatpush1.msra.mxu0 %v1132
        %1242 = vmatprep.subr.mxu0 0.0
        %1243 = vmatpush1.msra.mxu0 %v1133
        %1244 = vmatprep.subr.mxu0 0.0
        %1245 = vmatpush1.msra.mxu0 %v1134
        %1246 = vmatprep.subr.mxu0 0.0
        %1247 = vmatpush1.msra.mxu0 %v1135
        %1248 = vmatprep.subr.mxu0 0.0
        %1249 = vmatpush1.msra.mxu0 %v1136
        %1250 = vmatprep.subr.mxu0 0.0
        %1251 = vmatpush1.msra.mxu0 %v1137
        %1252 = vmatprep.subr.mxu0 0.0
        %1253 = vmatpush1.msra.mxu0 %v1138
        %1254 = vmatprep.subr.mxu0 0.0
        %1255 = vmatpush1.msra.mxu0 %v1139
        %1256 = vmatprep.subr.mxu0 0.0
        %1257 = vmatpush1.msra.mxu0 %v1140
        %1258 = vmatprep.subr.mxu0 0.0
        %1259 = vmatpush1.msra.mxu0 %v1141
        %1260 = vmatprep.subr.mxu0 0.0
        %1261 = vmatpush1.msra.mxu0 %v1142
        %1262 = vmatprep.subr.mxu0 0.0
        %1263 = vmatpush1.msra.mxu0 %v1143
        %1264 = vmatprep.subr.mxu0 0.0
        %1265 = vmatpush1.msra.mxu0 %v1144
        %1266 = vmatprep.subr.mxu0 0.0
        %1267 = vmatpush1.msra.mxu0 %v1145
        %1268 = vmatprep.subr.mxu0 0.0
        %1269 = vmatpush1.msra.mxu0 %v1146
        %1270 = vmatprep.subr.mxu0 0.0
        %1271 = vmatpush1.msra.mxu0 %v1147
        %1272 = vmatprep.subr.mxu0 0.0
        %1273 = vmatpush1.msra.mxu0 0.0
        %1274 = vmatprep.subr.mxu0 0.0
        %1275 = vmatpush1.msra.mxu0 0.0
        %1276 = vmatprep.subr.mxu0 0.0
        %1277 = vmatpush1.msra.mxu0 0.0
        %1278 = vmatprep.subr.mxu0 0.0
        %1279 = vmatpush1.msra.mxu0 0.0
        %1280 = vmatprep.subr.mxu0 0.0
        %1281 = vmatpush1.msra.mxu0 0.0
        %1282 = vmatprep.subr.mxu0 0.0
        %1283 = vmatpush1.msra.mxu0 0.0
        %1284 = vmatprep.subr.mxu0 0.0
        %1285 = vmatpush1.msra.mxu0 0.0
        %1286 = vmatprep.subr.mxu0 0.0
        %1287 = vmatpush1.msra.mxu0 0.0
        %1288 = vmatprep.subr.mxu0 0.0
        %1289 = vmatpush1.msra.mxu0 0.0
        %1290 = vmatprep.subr.mxu0 0.0
        %1291 = vmatpush1.msra.mxu0 0.0
        %1292 = vmatprep.subr.mxu0 0.0
        %1293 = vmatpush1.msra.mxu0 0.0
        %1294 = vmatprep.subr.mxu0 0.0
        %1295 = vmatpush1.msra.mxu0 0.0
        %1296 = vmatprep.subr.mxu0 0.0
        %1297 = vmatpush1.msra.mxu0 0.0
        %1298 = vmatprep.subr.mxu0 0.0
        %1299 = vmatpush1.msra.mxu0 0.0
        %1300 = vmatprep.subr.mxu0 0.0
        %1301 = vmatpush1.msra.mxu0 0.0
        %1302 = vmatprep.subr.mxu0 0.0
        %1303 = vmatpush1.msra.mxu0 0.0
        %1304 = vmatprep.mubr.f32.mxu0 0.0
        %1305 = vmatmul.mubr.f32.gmra.mrb[0].mxu0 %v1130
        %v1306 = vpop.f32.mrb[0].mxu0
        %v1307 = vadd.f32 %v1232, %v1306
        %v1308 = vpop.f32.mrb[0].mxu0
        %1309 = vmatprep.mubr.f32.mxu0 0.0
        %1310 = vmatmul.mubr.f32.gmra.mrb[0].mxu0 %v1126
        %v1311 = vpop.f32.mrb[0].mxu0
        %v1312 = vadd.f32 %v1237, %v1311
        %v1313 = vpop.f32.mrb[0].mxu0
        %1314 = vdwg.mxu0
        %s1315 = scalar_lea.vmem [#allocation4], 256
        %v1316 = vld [vmem:[%s1315] sm:$0xff]
        %v1317 = vld [vmem:[%s1315 + $0x8] sm:$0xff]
        %v1318 = vld [vmem:[%s1315 + $0x10] sm:$0xff]
        %v1319 = vld [vmem:[%s1315 + $0x18] sm:$0xff]
        %v1320 = vld [vmem:[%s1315 + $0x20] sm:$0xff]
        %v1321 = vld [vmem:[%s1315 + $0x28] sm:$0xff]
        %v1322 = vld [vmem:[%s1315 + $0x30] sm:$0xff]
        %v1323 = vld [vmem:[%s1315 + $0x38] sm:$0xff]
        %v1324 = vld [vmem:[%s1315 + $0x40] sm:$0xff]
        %v1325 = vld [vmem:[%s1315 + $0x48] sm:$0xff]
        %v1326 = vld [vmem:[%s1315 + $0x50] sm:$0xff]
        %v1327 = vld [vmem:[%s1315 + $0x58] sm:$0xff]
        %v1328 = vld [vmem:[%s1315 + $0x60] sm:$0xff]
        %v1329 = vld [vmem:[%s1315 + $0x68] sm:$0xff]
        %v1330 = vld [vmem:[%s1315 + $0x70] sm:$0xff]
        %v1331 = vld [vmem:[%s1315 + $0x78] sm:$0xff]
        %v1334 = vrot.slane %v1130, 2
        %v1335 = vrot.slane %v1126, 2
        %v1336 = vsel %vm699, %v1334, %v1335
        %v1337 = vrot.slane %v1131, 2
        %v1338 = vsel %vm699, %v1335, %v1337
        %1341 = vmatprep.subr.mxu0 0.0
        %1342 = vmatpush1.msra.mxu0 %v1316
        %1343 = vmatprep.subr.mxu0 0.0
        %1344 = vmatpush1.msra.mxu0 %v1317
        %1345 = vmatprep.subr.mxu0 0.0
        %1346 = vmatpush1.msra.mxu0 %v1318
        %1347 = vmatprep.subr.mxu0 0.0
        %1348 = vmatpush1.msra.mxu0 %v1319
        %1349 = vmatprep.subr.mxu0 0.0
        %1350 = vmatpush1.msra.mxu0 %v1320
        %1351 = vmatprep.subr.mxu0 0.0
        %1352 = vmatpush1.msra.mxu0 %v1321
        %1353 = vmatprep.subr.mxu0 0.0
        %1354 = vmatpush1.msra.mxu0 %v1322
        %1355 = vmatprep.subr.mxu0 0.0
        %1356 = vmatpush1.msra.mxu0 %v1323
        %1357 = vmatprep.subr.mxu0 0.0
        %1358 = vmatpush1.msra.mxu0 %v1324
        %1359 = vmatprep.subr.mxu0 0.0
        %1360 = vmatpush1.msra.mxu0 %v1325
        %1361 = vmatprep.subr.mxu0 0.0
        %1362 = vmatpush1.msra.mxu0 %v1326
        %1363 = vmatprep.subr.mxu0 0.0
        %1364 = vmatpush1.msra.mxu0 %v1327
        %1365 = vmatprep.subr.mxu0 0.0
        %1366 = vmatpush1.msra.mxu0 %v1328
        %1367 = vmatprep.subr.mxu0 0.0
        %1368 = vmatpush1.msra.mxu0 %v1329
        %1369 = vmatprep.subr.mxu0 0.0
        %1370 = vmatpush1.msra.mxu0 %v1330
        %1371 = vmatprep.subr.mxu0 0.0
        %1372 = vmatpush1.msra.mxu0 %v1331
        %1373 = vmatprep.subr.mxu0 0.0
        %1374 = vmatpush1.msra.mxu0 0.0
        %1375 = vmatprep.subr.mxu0 0.0
        %1376 = vmatpush1.msra.mxu0 0.0
        %1377 = vmatprep.subr.mxu0 0.0
        %1378 = vmatpush1.msra.mxu0 0.0
        %1379 = vmatprep.subr.mxu0 0.0
        %1380 = vmatpush1.msra.mxu0 0.0
        %1381 = vmatprep.subr.mxu0 0.0
        %1382 = vmatpush1.msra.mxu0 0.0
        %1383 = vmatprep.subr.mxu0 0.0
        %1384 = vmatpush1.msra.mxu0 0.0
        %1385 = vmatprep.subr.mxu0 0.0
        %1386 = vmatpush1.msra.mxu0 0.0
        %1387 = vmatprep.subr.mxu0 0.0
        %1388 = vmatpush1.msra.mxu0 0.0
        %1389 = vmatprep.subr.mxu0 0.0
        %1390 = vmatpush1.msra.mxu0 0.0
        %1391 = vmatprep.subr.mxu0 0.0
        %1392 = vmatpush1.msra.mxu0 0.0
        %1393 = vmatprep.subr.mxu0 0.0
        %1394 = vmatpush1.msra.mxu0 0.0
        %1395 = vmatprep.subr.mxu0 0.0
        %1396 = vmatpush1.msra.mxu0 0.0
        %1397 = vmatprep.subr.mxu0 0.0
        %1398 = vmatpush1.msra.mxu0 0.0
        %1399 = vmatprep.subr.mxu0 0.0
        %1400 = vmatpush1.msra.mxu0 0.0
        %1401 = vmatprep.subr.mxu0 0.0
        %1402 = vmatpush1.msra.mxu0 0.0
        %1403 = vmatprep.subr.mxu0 0.0
        %1404 = vmatpush1.msra.mxu0 0.0
        %1405 = vmatprep.mubr.f32.mxu0 0.0
        %1406 = vmatmul.mubr.f32.gmra.mrb[0].mxu0 %v1336
        %v1407 = vpop.f32.mrb[0].mxu0
        %v1408 = vadd.f32 0.0, %v1407
        %v1409 = vpop.f32.mrb[0].mxu0
        %1410 = vmatprep.mubr.f32.mxu0 0.0
        %1411 = vmatmul.mubr.f32.gmra.mrb[0].mxu0 %v1338
        %v1412 = vpop.f32.mrb[0].mxu0
        %v1413 = vadd.f32 0.0, %v1412
        %v1414 = vpop.f32.mrb[0].mxu0
        %1415 = vdwg.mxu0
        %v1416 = vadd.f32 %v1307, %v1408
        %v1417 = vadd.f32 %v1312, %v1413
        %v1419 = vlaneseq
        %v1420 = vshrl.u32 %v1419, 7
        %v1421 = vsub.s32 0, %v1420
        %v1422 = vrot.slane %v1120, %v1421
        %v1424 = vmul.f32 %v1416, %v1422
        %v1425 = vmul.f32 %v1417, %v1422
        %v1427 = vlaneseq
        %v1428 = vshrl.u32 %v1427, 7
        %v1429 = vsub.s32 0, %v1428
        %v1430 = vrot.slane %v1121, %v1429
        %v1432 = vadd.f32 %v1424, %v1430
        %v1433 = vadd.f32 %v1425, %v1430
        %v1434 = vmax.f32 %v1432, 0.0
        %v1435 = vmax.f32 %v1433, 0.0
        %v1436 = vadd.f32 %v1434, %v802
        %v1437 = vadd.f32 %v1435, %v803
        %1438 = vst [vmem:[%s497] sm:$0xff] %v1436
        %1439 = vst [vmem:[%s497 + $0x8] sm:$0xff] %v1437
        %v1440 = vld [vmem:[#allocation6] sm:$0xff]
        %v1441 = vld [vmem:[#allocation6 + $0x8] sm:$0xff]
        %v1442 = vld [vmem:[#allocation6 + $0x10] sm:$0xff]
        %v1443 = vld [vmem:[#allocation6 + $0x18] sm:$0xff]
        %v1444 = vld [vmem:[#allocation6 + $0x20] sm:$0xff]
        %v1445 = vld [vmem:[#allocation6 + $0x28] sm:$0xff]
        %v1446 = vld [vmem:[#allocation6 + $0x30] sm:$0xff]
        %v1447 = vld [vmem:[#allocation6 + $0x38] sm:$0xff]
        %v1448 = vld [vmem:[#allocation6 + $0x40] sm:$0xff]
        %v1449 = vld [vmem:[#allocation6 + $0x48] sm:$0xff]
        %v1450 = vld [vmem:[#allocation6 + $0x50] sm:$0xff]
        %v1451 = vld [vmem:[#allocation6 + $0x58] sm:$0xff]
        %v1452 = vld [vmem:[#allocation6 + $0x60] sm:$0xff]
        %v1453 = vld [vmem:[#allocation6 + $0x68] sm:$0xff]
        %v1454 = vld [vmem:[#allocation6 + $0x70] sm:$0xff]
        %v1455 = vld [vmem:[#allocation6 + $0x78] sm:$0xff]
        %v1456 = vld [vmem:[#allocation6 + $0x80] sm:$0xff]
        %v1457 = vld [vmem:[#allocation6 + $0x88] sm:$0xff]
        %v1458 = vld [vmem:[#allocation6 + $0x90] sm:$0xff]
        %v1459 = vld [vmem:[#allocation6 + $0x98] sm:$0xff]
        %v1460 = vld [vmem:[#allocation6 + $0xa0] sm:$0xff]
        %v1461 = vld [vmem:[#allocation6 + $0xa8] sm:$0xff]
        %v1462 = vld [vmem:[#allocation6 + $0xb0] sm:$0xff]
        %v1463 = vld [vmem:[#allocation6 + $0xb8] sm:$0xff]
        %v1464 = vld [vmem:[#allocation6 + $0xc0] sm:$0xff]
        %v1465 = vld [vmem:[#allocation6 + $0xc8] sm:$0xff]
        %v1466 = vld [vmem:[#allocation6 + $0xd0] sm:$0xff]
        %v1467 = vld [vmem:[#allocation6 + $0xd8] sm:$0xff]
        %v1468 = vld [vmem:[#allocation6 + $0xe0] sm:$0xff]
        %v1469 = vld [vmem:[#allocation6 + $0xe8] sm:$0xff]
        %v1470 = vld [vmem:[#allocation6 + $0xf0] sm:$0xff]
        %v1471 = vld [vmem:[#allocation6 + $0xf8] sm:$0xff]
        %v1472 = vld [vmem:[%s11] sm:$0x3]
        %v1474 = vlaneseq
        %v1475 = vshrl.u32 %v1474, 7
        %v1476 = vsub.s32 0, %v1475
        %v1477 = vrot.slane %v1472, %v1476
        %v1478 = vlaneseq
        %v1479 = vshrl.u32 %v1478, 7
        %v1480 = vsub.s32 1, %v1479
        %v1481 = vrot.slane %v1472, %v1480
        %1484 = vmatprep.subr.mxu0 %v1441
        %1485 = vmatpush1.msra.mxu0 %v1440
        %1486 = vmatprep.subr.mxu0 %v1443
        %1487 = vmatpush1.msra.mxu0 %v1442
        %1488 = vmatprep.subr.mxu0 %v1445
        %1489 = vmatpush1.msra.mxu0 %v1444
        %1490 = vmatprep.subr.mxu0 %v1447
        %1491 = vmatpush1.msra.mxu0 %v1446
        %1492 = vmatprep.subr.mxu0 %v1449
        %1493 = vmatpush1.msra.mxu0 %v1448
        %1494 = vmatprep.subr.mxu0 %v1451
        %1495 = vmatpush1.msra.mxu0 %v1450
        %1496 = vmatprep.subr.mxu0 %v1453
        %1497 = vmatpush1.msra.mxu0 %v1452
        %1498 = vmatprep.subr.mxu0 %v1455
        %1499 = vmatpush1.msra.mxu0 %v1454
        %1500 = vmatprep.subr.mxu0 %v1457
        %1501 = vmatpush1.msra.mxu0 %v1456
        %1502 = vmatprep.subr.mxu0 %v1459
        %1503 = vmatpush1.msra.mxu0 %v1458
        %1504 = vmatprep.subr.mxu0 %v1461
        %1505 = vmatpush1.msra.mxu0 %v1460
        %1506 = vmatprep.subr.mxu0 %v1463
        %1507 = vmatpush1.msra.mxu0 %v1462
        %1508 = vmatprep.subr.mxu0 %v1465
        %1509 = vmatpush1.msra.mxu0 %v1464
        %1510 = vmatprep.subr.mxu0 %v1467
        %1511 = vmatpush1.msra.mxu0 %v1466
        %1512 = vmatprep.subr.mxu0 %v1469
        %1513 = vmatpush1.msra.mxu0 %v1468
        %1514 = vmatprep.subr.mxu0 %v1471
        %1515 = vmatpush1.msra.mxu0 %v1470
        %1516 = vmatprep.subr.mxu0 0.0
        %1517 = vmatpush1.msra.mxu0 0.0
        %1518 = vmatprep.subr.mxu0 0.0
        %1519 = vmatpush1.msra.mxu0 0.0
        %1520 = vmatprep.subr.mxu0 0.0
        %1521 = vmatpush1.msra.mxu0 0.0
        %1522 = vmatprep.subr.mxu0 0.0
        %1523 = vmatpush1.msra.mxu0 0.0
        %1524 = vmatprep.subr.mxu0 0.0
        %1525 = vmatpush1.msra.mxu0 0.0
        %1526 = vmatprep.subr.mxu0 0.0
        %1527 = vmatpush1.msra.mxu0 0.0
        %1528 = vmatprep.subr.mxu0 0.0
        %1529 = vmatpush1.msra.mxu0 0.0
        %1530 = vmatprep.subr.mxu0 0.0
        %1531 = vmatpush1.msra.mxu0 0.0
        %1532 = vmatprep.subr.mxu0 0.0
        %1533 = vmatpush1.msra.mxu0 0.0
        %1534 = vmatprep.subr.mxu0 0.0
        %1535 = vmatpush1.msra.mxu0 0.0
        %1536 = vmatprep.subr.mxu0 0.0
        %1537 = vmatpush1.msra.mxu0 0.0
        %1538 = vmatprep.subr.mxu0 0.0
        %1539 = vmatpush1.msra.mxu0 0.0
        %1540 = vmatprep.subr.mxu0 0.0
        %1541 = vmatpush1.msra.mxu0 0.0
        %1542 = vmatprep.subr.mxu0 0.0
        %1543 = vmatpush1.msra.mxu0 0.0
        %1544 = vmatprep.subr.mxu0 0.0
        %1545 = vmatpush1.msra.mxu0 0.0
        %1546 = vmatprep.subr.mxu0 0.0
        %1547 = vmatpush1.msra.mxu0 0.0
        %1548 = vmatprep.mubr.f32.mxu0 0.0
        %1549 = vmatmul.mubr.f32.gmra.mrb[0].mxu0 %v1436
        %v1550 = vpop.f32.mrb[0].mxu0
        %v1551 = vadd.f32 %v1477, %v1550
        %v1552 = vpop.f32.mrb[0].mxu0
        %v1553 = vadd.f32 %v1481, %v1552
        %1554 = vmatprep.mubr.f32.mxu0 0.0
        %1555 = vmatmul.mubr.f32.gmra.mrb[0].mxu0 %v1437
        %v1556 = vpop.f32.mrb[0].mxu0
        %v1557 = vadd.f32 %v1477, %v1556
        %v1558 = vpop.f32.mrb[0].mxu0
        %v1559 = vadd.f32 %v1481, %v1558
        %1560 = vdwg.mxu0
        %1561 = vst [vmem:[%s492] sm:$0xff] %v1551
        %1562 = vst [vmem:[%s492 + $0x8] sm:$0xff] %v1553
        %1563 = vst [vmem:[%s492 + $0x10] sm:$0xff] %v1557
        %1564 = vst [vmem:[%s492 + $0x18] sm:$0xff] %v1559
        %p1565 = scmp.lt.s32.totalorder %s27, 1
        %s1566 = scalar_select %p1565, %s27, 1
        %s1567 = smul.addr %s1566, 4
        %s1568 = smul.addr %s1567, 8
        %s1569 = scalar_lea.vmem %s12, %s1568
        %p1570 = scmp.lt.s32.totalorder %s27, 1
        %s1571 = scalar_select %p1570, %s27, 1
        %s1572 = smul.addr %s1571, 2
        %s1573 = smul.addr %s1572, 8
        %s1574 = scalar_lea.vmem %s13, %s1573
        // Predicated region
        $region81: #{my_mid_block_forward.1} parent=67 // pred_check
          %p1575 = pneg %p302
        $region82: #{my_mid_block_forward.1} parent=67 // pred_check_branch
          %1577 = sbr.rel (%p1575) target = $region84
        $region83: #{my_mid_block_forward.1} parent=67 // pred_region
          _
        $region84: #{my_mid_block_forward.1} parent=67 // pred_fallthru
          _
        // Predicated region
        $region85: #{my_mid_block_forward.1} parent=67 // pred_check
          %p1578 = pneg %p328
        $region86: #{my_mid_block_forward.1} parent=67 // pred_check_branch
          %1580 = sbr.rel (%p1578) target = $region88
        $region87: #{my_mid_block_forward.1} parent=67 // pred_region
          _
        $region88: #{my_mid_block_forward.1} parent=67 // pred_fallthru
          _
      $region68: #{my_mid_block_forward.1} parent=5 // pred_fallthru
        _
      %p1581 = scmp.le.s32.totalorder 2, %s22
      // Predicated region
      $region89: #{my_mid_block_forward.1} parent=5 // pred_check
        %p1582 = pneg %p1581
      $region90: #{my_mid_block_forward.1} parent=5 // pred_check_branch
        %1584 = sbr.rel (%p1582) target = $region92
      $region91: #{my_mid_block_forward.1} parent=5 // pred_region
        %s1585 = ssub.s32 %s22, 2
        // Predicated region
        $region93: #{my_mid_block_forward.1} parent=91 // pred_check
          %p1586 = pneg %p308
        $region94: #{my_mid_block_forward.1} parent=91 // pred_check_branch
          %1588 = sbr.rel (%p1586) target = $region96
        $region95: #{my_mid_block_forward.1} parent=91 // pred_region
          %p1589 = scmp.lt.s32.totalorder %s28, 1
          %s1590 = scalar_select %p1589, %s28, 1
          %s1591 = smul.addr %s1590, 4
          %s1592 = smul.addr %s1591, 8
          %s1593 = scalar_lea.vmem %s12, %s1592
        $region96: #{my_mid_block_forward.1} parent=91 // pred_fallthru
          _
        // Predicated region
        $region97: #{my_mid_block_forward.1} parent=91 // pred_check
          %p1594 = pneg %p334
        $region98: #{my_mid_block_forward.1} parent=91 // pred_check_branch
          %1596 = sbr.rel (%p1594) target = $region100
        $region99: #{my_mid_block_forward.1} parent=91 // pred_region
          %p1597 = scmp.lt.s32.totalorder %s28, 1
          %s1598 = scalar_select %p1597, %s28, 1
          %s1599 = smul.addr %s1598, 2
          %s1600 = smul.addr %s1599, 8
          %s1601 = scalar_lea.vmem %s13, %s1600
        $region100: #{my_mid_block_forward.1} parent=91 // pred_fallthru
          _
      $region92: #{my_mid_block_forward.1} parent=5 // pred_fallthru
        _
    $region6: #{my_mid_block_forward.1} parent=1 // loop_footer
      %s26 = sadd.s32 1, %s22
    $region7: #{my_mid_block_forward.1} parent=1 // loop_footer_branch
      %21 = sbr.rel target = $region3
    $region8: #{my_mid_block_forward.1} parent=1 // loop_exit
      _
    %1602 = vsyncpa [#allocation3], 1
    %s1603 = scalar_lea.sflag [#allocation3], 1
    %1604 = vsyncpa %s1603, 1
    %1605 = vsyncpa [#allocation5], 1

</llo_original>
